<compile_context>
chip_gen: v7x
topology: tpu7x:2x2x1
jax: 0.10.0
libtpu: 0.0.40
codegen_flags: <defaults>
</compile_context>

<pallas_src>
import functools

import jax
import jax.numpy as jnp
import numpy as np
from jax import lax
from jax.experimental import pallas as pl
from jax.experimental.pallas import tpu as pltpu


def _lstm_ln_swish_kernel(gx_ref, whh_ref, lnw_ref, lnb_ref,
                          out_ref, hn_ref, cn_ref,
                          *, hidden_size, block_t, eps):
    """One grid step: TT timesteps of LSTM recurrence + LayerNorm + Swish.

    gx_ref : (TB, TT, 4H)  precomputed x @ W_ih^T + bias for this block
    whh_ref: (H, 4H)       recurrent weights (transposed, PyTorch gate order)
    out_ref: (TB, TT, H)   LayerNorm+Swish output, batch-first
    hn_ref : (TB, H)       final hidden state; also the recurrent carry
    cn_ref : (TB, H)       final cell state;   also the recurrent carry
    """
    H = hidden_size

    # First time-block of this batch block: zero-initialize the carry.
    @pl.when(pl.program_id(1) == 0)
    def _():
        hn_ref[...] = jnp.zeros_like(hn_ref)
        cn_ref[...] = jnp.zeros_like(cn_ref)

    w_hh = whh_ref[...]                     # (H, 4H), VMEM resident
    ln_w = lnw_ref[...]                     # (1, H)
    ln_b = lnb_ref[...]                     # (1, H)

    h = hn_ref[...]                         # (TB, H) carry
    c = cn_ref[...]                         # (TB, H) carry

    # Fully unrolled inner loop over the TT timesteps of this block (TT is a
    # small static constant, so all slices below are static / lane-aligned).
    for s in range(block_t):
        gates = gx_ref[:, s, :] + jnp.dot(
            h.astype(w_hh.dtype), w_hh, preferred_element_type=jnp.float32)

        # PyTorch gate order: i, f, g, o.  i and f are adjacent -> one sigmoid.
        if_act = jax.nn.sigmoid(gates[:, : 2 * H])
        i_g = if_act[:, :H]
        f_g = if_act[:, H:]
        g_g = jnp.tanh(gates[:, 2 * H: 3 * H])
        o_g = jax.nn.sigmoid(gates[:, 3 * H:])

        c = f_g * c + i_g * g_g
        h = o_g * jnp.tanh(c)

        # LayerNorm over the hidden dim, then Swish.
        mean = jnp.mean(h, axis=-1, keepdims=True)
        var = jnp.mean((h - mean) ** 2, axis=-1, keepdims=True)
        y = (h - mean) * lax.rsqrt(var + eps) * ln_w + ln_b
        out_ref[:, s, :] = y * jax.nn.sigmoid(y)

    # Carry writeback (constant block index along the time axis -> stays in
    # VMEM; HBM writeback only when the batch block changes / at the end).
    hn_ref[...] = h
    cn_ref[...] = c


def _pick_time_block(T):
    for tt in (32, 16, 8):
        if T % tt == 0:
            return tt
    return T          # whole sequence in one block (always layout-legal)


def _pick_batch_block(B):
    if B % 8 == 0:
        for tb in (32, 16, 8):
            if B % tb == 0:
                return tb
    return B


def lstm_layer_forward(x, params, *, eps=1e-5, compute_dtype=jnp.float32):
    """x: (B, T, D) float32. Returns (out (B,T,H), (h_n (1,B,H), c_n (1,B,H)))."""
    B, T, D = x.shape
    H = params["w_hh"].shape[1]             # w_hh is (4H, H)

    # ---- hoisted input projection: one big, MXU-shaped matmul --------------
    w_ih_t = jnp.transpose(params["w_ih"]).astype(compute_dtype)       # (D, 4H)
    bias = (params["b_ih"] + params["b_hh"]).reshape(1, 1, 4 * H)
    gates_x = (jnp.einsum("btd,dg->btg", x.astype(compute_dtype), w_ih_t,
                          preferred_element_type=jnp.float32)
               + bias).astype(jnp.float32)                             # (B, T, 4H)

    w_hh_t = jnp.transpose(params["w_hh"]).astype(compute_dtype)       # (H, 4H)
    ln_w = params["ln_w"].reshape(1, H).astype(jnp.float32)
    ln_b = params["ln_b"].reshape(1, H).astype(jnp.float32)

    # ---- block sizes & grid -------------------------------------------------
    TT = _pick_time_block(T)                # timesteps per grid step
    TB = _pick_batch_block(B)               # batch rows per grid step
    grid = (B // TB, T // TT)

    kernel = functools.partial(
        _lstm_ln_swish_kernel, hidden_size=H, block_t=TT, eps=eps)

    out, h_n, c_n = pl.pallas_call(
        kernel,
        out_shape=(
            jax.ShapeDtypeStruct((B, T, H), jnp.float32),
            jax.ShapeDtypeStruct((B, H), jnp.float32),
            jax.ShapeDtypeStruct((B, H), jnp.float32),
        ),
        grid_spec=pltpu.PrefetchScalarGridSpec(
            num_scalar_prefetch=0,
            grid=grid,
            in_specs=[
                pl.BlockSpec((TB, TT, 4 * H), lambda b, t: (b, t, 0)),  # gates_x
                pl.BlockSpec((H, 4 * H), lambda b, t: (0, 0)),          # W_hh^T
                pl.BlockSpec((1, H), lambda b, t: (0, 0)),              # ln weight
                pl.BlockSpec((1, H), lambda b, t: (0, 0)),              # ln bias
            ],
            out_specs=[
                pl.BlockSpec((TB, TT, H), lambda b, t: (b, t, 0)),      # out
                pl.BlockSpec((TB, H), lambda b, t: (b, 0)),             # h_n (carry)
                pl.BlockSpec((TB, H), lambda b, t: (b, 0)),             # c_n (carry)
            ],
        ),
        compiler_params=pltpu.CompilerParams(
            dimension_semantics=("parallel", "arbitrary"),  # batch || , time seq
            vmem_limit_bytes=32 * 1024 * 1024,
        ),
    )(gates_x, w_hh_t, ln_w, ln_b)

    return out, (h_n[None], c_n[None])


def _reference_forward(x, params, *, eps=1e-5):
    """Pure-JAX reference matching nn.LSTM + LayerNorm + Swish semantics."""
    B, T, D = x.shape
    H = params["w_hh"].shape[1]
    w_ih_t = params["w_ih"].T
    w_hh_t = params["w_hh"].T
    bias = params["b_ih"] + params["b_hh"]

    def step(carry, x_t):
        h, c = carry
        gates = x_t @ w_ih_t + h @ w_hh_t + bias
        i = jax.nn.sigmoid(gates[:, 0 * H:1 * H])
        f = jax.nn.sigmoid(gates[:, 1 * H:2 * H])
        g = jnp.tanh(gates[:, 2 * H:3 * H])
        o = jax.nn.sigmoid(gates[:, 3 * H:4 * H])
        c = f * c + i * g
        h = o * jnp.tanh(c)
        return (h, c), h

    init = (jnp.zeros((B, H), jnp.float32), jnp.zeros((B, H), jnp.float32))
    (h_n, c_n), hs = jax.lax.scan(step, init, jnp.transpose(x, (1, 0, 2)))
    hs = jnp.transpose(hs, (1, 0, 2))              # (B, T, H)
    mean = jnp.mean(hs, axis=-1, keepdims=True)
    var = jnp.mean((hs - mean) ** 2, axis=-1, keepdims=True)
    y = (hs - mean) * lax.rsqrt(var + eps) * params["ln_w"] + params["ln_b"]
    out = y * jax.nn.sigmoid(y)
    return out, (h_n[None], c_n[None])


def init_params(key, input_size, hidden_size):
    """Deterministic synthetic params mimicking nn.LSTM's uniform(-k, k) init."""
    k = 1.0 / np.sqrt(hidden_size)
    k1, k2, k3, k4 = jax.random.split(key, 4)
    return {
        "w_ih": jax.random.uniform(k1, (4 * hidden_size, input_size),
                                   jnp.float32, -k, k),
        "w_hh": jax.random.uniform(k2, (4 * hidden_size, hidden_size),
                                   jnp.float32, -k, k),
        "b_ih": jax.random.uniform(k3, (4 * hidden_size,), jnp.float32, -k, k),
        "b_hh": jax.random.uniform(k4, (4 * hidden_size,), jnp.float32, -k, k),
        "ln_w": jnp.ones((hidden_size,), jnp.float32),
        "ln_b": jnp.zeros((hidden_size,), jnp.float32),
    }


if __name__ == "__main__":
    B, T, D, H = 2, 8, 4, 32
    key = jax.random.PRNGKey(0)
    kx, kp = jax.random.split(key)
    x = jax.random.normal(kx, (B, T, D), jnp.float32)
    params = init_params(kp, D, H)

    out, (h_n, c_n) = lstm_layer_forward(x, params)
    jax.block_until_ready((out, h_n, c_n))

    ref_out, (ref_h, ref_c) = _reference_forward(x, params)
    np.testing.assert_allclose(np.asarray(out), np.asarray(ref_out),
                               rtol=1e-4, atol=1e-5)
    np.testing.assert_allclose(np.asarray(h_n), np.asarray(ref_h),
                               rtol=1e-4, atol=1e-5)
    np.testing.assert_allclose(np.asarray(c_n), np.asarray(ref_c),
                               rtol=1e-4, atol=1e-5)

    print("KERNEL_OK")
</pallas_src>

<mosaic_0001>
module attributes {stable_mosaic.version = 11 : i64} {
  func.func @_lstm_ln_swish_kernel(%arg0: i32, %arg1: i32, %arg2: memref<2x8x128xf32, #tpu.memory_space<vmem>>, %arg3: memref<32x128xf32, #tpu.memory_space<vmem>>, %arg4: memref<1x32xf32, #tpu.memory_space<vmem>>, %arg5: memref<1x32xf32, #tpu.memory_space<vmem>>, %arg6: memref<2x8x32xf32, #tpu.memory_space<vmem>>, %arg7: memref<2x32xf32, #tpu.memory_space<vmem>>, %arg8: memref<2x32xf32, #tpu.memory_space<vmem>>) attributes {dimension_semantics = [#tpu.dimension_semantics<parallel>, #tpu.dimension_semantics<arbitrary>], iteration_bounds = array<i64: 1, 1>, scalar_prefetch = 0 : i64, scratch_operands = 0 : i64, tpu.core_type = #tpu.core_type<tc>, window_params = [{transform_indices = @transform_0, window_bounds = array<i64: 2, 8, 128>}, {pipeline_mode = #tpu.pipeline_mode<synchronous>, transform_indices = @transform_1, window_bounds = array<i64: 32, 128>}, {pipeline_mode = #tpu.pipeline_mode<synchronous>, transform_indices = @transform_2, window_bounds = array<i64: 1, 32>}, {pipeline_mode = #tpu.pipeline_mode<synchronous>, transform_indices = @transform_3, window_bounds = array<i64: 1, 32>}, {transform_indices = @transform_4, window_bounds = array<i64: 2, 8, 32>}, {transform_indices = @transform_5, window_bounds = array<i64: 2, 32>}, {transform_indices = @transform_6, window_bounds = array<i64: 2, 32>}]} {
    %c0_i32 = arith.constant 0 : i32
    %0 = arith.cmpi eq, %arg1, %c0_i32 : i32
    %1 = arith.extui %0 : i1 to i32
    %c0_i32_0 = arith.constant 0 : i32
    %2 = arith.cmpi ne, %1, %c0_i32_0 : i32
    scf.if %2 {
      %cst_126 = arith.constant 0.000000e+00 : f32
      %458 = vector.broadcast %cst_126 : f32 to vector<2x32xf32>
      %c0_127 = arith.constant 0 : index
      %c0_128 = arith.constant 0 : index
      %459 = vector.load %arg7[%c0_127, %c0_128] : memref<2x32xf32, #tpu.memory_space<vmem>>, vector<2x32xf32>
      tpu.vector_store %arg7[%c0_127, %c0_128], %458 {strides = array<i32>} : memref<2x32xf32, #tpu.memory_space<vmem>>, vector<2x32xf32>,
      %cst_129 = arith.constant 0.000000e+00 : f32
      %460 = vector.broadcast %cst_129 : f32 to vector<2x32xf32>
      %c0_130 = arith.constant 0 : index
      %c0_131 = arith.constant 0 : index
      %461 = vector.load %arg8[%c0_130, %c0_131] : memref<2x32xf32, #tpu.memory_space<vmem>>, vector<2x32xf32>
      tpu.vector_store %arg8[%c0_130, %c0_131], %460 {strides = array<i32>} : memref<2x32xf32, #tpu.memory_space<vmem>>, vector<2x32xf32>,
    } else {
    }
    %c0 = arith.constant 0 : index
    %c0_1 = arith.constant 0 : index
    %3 = vector.load %arg3[%c0, %c0_1] : memref<32x128xf32, #tpu.memory_space<vmem>>, vector<32x128xf32>
    %c0_2 = arith.constant 0 : index
    %c0_3 = arith.constant 0 : index
    %4 = vector.load %arg4[%c0_2, %c0_3] : memref<1x32xf32, #tpu.memory_space<vmem>>, vector<1x32xf32>
    %c0_4 = arith.constant 0 : index
    %c0_5 = arith.constant 0 : index
    %5 = vector.load %arg5[%c0_4, %c0_5] : memref<1x32xf32, #tpu.memory_space<vmem>>, vector<1x32xf32>
    %c0_6 = arith.constant 0 : index
    %c0_7 = arith.constant 0 : index
    %6 = vector.load %arg7[%c0_6, %c0_7] : memref<2x32xf32, #tpu.memory_space<vmem>>, vector<2x32xf32>
    %c0_8 = arith.constant 0 : index
    %c0_9 = arith.constant 0 : index
    %7 = vector.load %arg8[%c0_8, %c0_9] : memref<2x32xf32, #tpu.memory_space<vmem>>, vector<2x32xf32>
    %c0_10 = arith.constant 0 : index
    %c0_11 = arith.constant 0 : index
    %c0_12 = arith.constant 0 : index
    %8 = vector.load %arg2[%c0_10, %c0_11, %c0_12] : memref<2x8x128xf32, #tpu.memory_space<vmem>>, vector<2x1x128xf32>
    %9 = vector.shape_cast %8 : vector<2x1x128xf32> to vector<2x128xf32>
    %cst = arith.constant dense<0.000000e+00> : vector<2x128xf32>
    %10 = tpu.matmul %6, %3, %cst {dimension_numbers = #tpu.dot_dimension_numbers<[1], [0], [0], [1], [0, 0, 1, 1], [], []>} : vector<2x32xf32>, vector<32x128xf32>, vector<2x128xf32> -> vector<2x128xf32>
    %11 = arith.addf %9, %10 : vector<2x128xf32>
    %12 = vector.extract_strided_slice %11 {offsets = [0, 0], sizes = [2, 64], strides = [1, 1]} : vector<2x128xf32> to vector<2x64xf32>
    %13 = arith.negf %12 : vector<2x64xf32>
    %14 = math.exp %13 : vector<2x64xf32>
    %cst_13 = arith.constant 1.000000e+00 : f32
    %15 = vector.broadcast %cst_13 : f32 to vector<2x64xf32>
    %16 = arith.addf %15, %14 : vector<2x64xf32>
    %17 = arith.divf %15, %16 : vector<2x64xf32>
    %18 = vector.extract_strided_slice %17 {offsets = [0, 0], sizes = [2, 32], strides = [1, 1]} : vector<2x64xf32> to vector<2x32xf32>
    %19 = vector.extract_strided_slice %17 {offsets = [0, 32], sizes = [2, 32], strides = [1, 1]} : vector<2x64xf32> to vector<2x32xf32>
    %20 = vector.extract_strided_slice %11 {offsets = [0, 64], sizes = [2, 32], strides = [1, 1]} : vector<2x128xf32> to vector<2x32xf32>
    %21 = math.tanh %20 : vector<2x32xf32>
    %22 = vector.extract_strided_slice %11 {offsets = [0, 96], sizes = [2, 32], strides = [1, 1]} : vector<2x128xf32> to vector<2x32xf32>
    %23 = arith.negf %22 : vector<2x32xf32>
    %24 = math.exp %23 : vector<2x32xf32>
    %cst_14 = arith.constant 1.000000e+00 : f32
    %25 = vector.broadcast %cst_14 : f32 to vector<2x32xf32>
    %26 = arith.addf %25, %24 : vector<2x32xf32>
    %27 = arith.divf %25, %26 : vector<2x32xf32>
    %28 = arith.mulf %19, %7 : vector<2x32xf32>
    %29 = arith.mulf %18, %21 : vector<2x32xf32>
    %30 = arith.addf %28, %29 : vector<2x32xf32>
    %31 = math.tanh %30 : vector<2x32xf32>
    %32 = arith.mulf %27, %31 : vector<2x32xf32>
    %cst_15 = arith.constant dense<0.000000e+00> : vector<2xf32>
    %33 = vector.multi_reduction <add>, %32, %cst_15 [1] : vector<2x32xf32> to vector<2xf32>
    %34 = vector.shape_cast %33 : vector<2xf32> to vector<2x1xf32>
    %cst_16 = arith.constant 3.200000e+01 : f32
    %35 = vector.broadcast %cst_16 : f32 to vector<2x1xf32>
    %36 = arith.divf %34, %35 : vector<2x1xf32>
    %37 = vector.broadcast %36 : vector<2x1xf32> to vector<2x32xf32>
    %38 = arith.subf %32, %37 : vector<2x32xf32>
    %39 = arith.mulf %38, %38 : vector<2x32xf32>
    %cst_17 = arith.constant dense<0.000000e+00> : vector<2xf32>
    %40 = vector.multi_reduction <add>, %39, %cst_17 [1] : vector<2x32xf32> to vector<2xf32>
    %41 = vector.shape_cast %40 : vector<2xf32> to vector<2x1xf32>
    %cst_18 = arith.constant 3.200000e+01 : f32
    %42 = vector.broadcast %cst_18 : f32 to vector<2x1xf32>
    %43 = arith.divf %41, %42 : vector<2x1xf32>
    %44 = vector.broadcast %36 : vector<2x1xf32> to vector<2x32xf32>
    %45 = arith.subf %32, %44 : vector<2x32xf32>
    %cst_19 = arith.constant 9.99999974E-6 : f32
    %46 = vector.broadcast %cst_19 : f32 to vector<2x1xf32>
    %47 = arith.addf %43, %46 : vector<2x1xf32>
    %48 = math.rsqrt %47 : vector<2x1xf32>
    %49 = vector.broadcast %48 : vector<2x1xf32> to vector<2x32xf32>
    %50 = arith.mulf %45, %49 : vector<2x32xf32>
    %51 = vector.broadcast %4 : vector<1x32xf32> to vector<2x32xf32>
    %52 = arith.mulf %50, %51 : vector<2x32xf32>
    %53 = vector.broadcast %5 : vector<1x32xf32> to vector<2x32xf32>
    %54 = arith.addf %52, %53 : vector<2x32xf32>
    %55 = arith.negf %54 : vector<2x32xf32>
    %56 = math.exp %55 : vector<2x32xf32>
    %cst_20 = arith.constant 1.000000e+00 : f32
    %57 = vector.broadcast %cst_20 : f32 to vector<2x32xf32>
    %58 = arith.addf %57, %56 : vector<2x32xf32>
    %59 = arith.divf %57, %58 : vector<2x32xf32>
    %60 = arith.mulf %54, %59 : vector<2x32xf32>
    %c0_21 = arith.constant 0 : index
    %c0_22 = arith.constant 0 : index
    %c0_23 = arith.constant 0 : index
    %61 = vector.load %arg6[%c0_21, %c0_22, %c0_23] : memref<2x8x32xf32, #tpu.memory_space<vmem>>, vector<2x1x32xf32>
    %62 = vector.shape_cast %61 : vector<2x1x32xf32> to vector<2x32xf32>
    %63 = vector.shape_cast %60 : vector<2x32xf32> to vector<2x1x32xf32>
    tpu.vector_store %arg6[%c0_21, %c0_22, %c0_23], %63 {strides = array<i32>} : memref<2x8x32xf32, #tpu.memory_space<vmem>>, vector<2x1x32xf32>,
    %c0_24 = arith.constant 0 : index
    %c1 = arith.constant 1 : index
    %c0_25 = arith.constant 0 : index
    %64 = vector.load %arg2[%c0_24, %c1, %c0_25] : memref<2x8x128xf32, #tpu.memory_space<vmem>>, vector<2x1x128xf32>
    %65 = vector.shape_cast %64 : vector<2x1x128xf32> to vector<2x128xf32>
    %cst_26 = arith.constant dense<0.000000e+00> : vector<2x128xf32>
    %66 = tpu.matmul %32, %3, %cst_26 {dimension_numbers = #tpu.dot_dimension_numbers<[1], [0], [0], [1], [0, 0, 1, 1], [], []>} : vector<2x32xf32>, vector<32x128xf32>, vector<2x128xf32> -> vector<2x128xf32>
    %67 = arith.addf %65, %66 : vector<2x128xf32>
    %68 = vector.extract_strided_slice %67 {offsets = [0, 0], sizes = [2, 64], strides = [1, 1]} : vector<2x128xf32> to vector<2x64xf32>
    %69 = arith.negf %68 : vector<2x64xf32>
    %70 = math.exp %69 : vector<2x64xf32>
    %cst_27 = arith.constant 1.000000e+00 : f32
    %71 = vector.broadcast %cst_27 : f32 to vector<2x64xf32>
    %72 = arith.addf %71, %70 : vector<2x64xf32>
    %73 = arith.divf %71, %72 : vector<2x64xf32>
    %74 = vector.extract_strided_slice %73 {offsets = [0, 0], sizes = [2, 32], strides = [1, 1]} : vector<2x64xf32> to vector<2x32xf32>
    %75 = vector.extract_strided_slice %73 {offsets = [0, 32], sizes = [2, 32], strides = [1, 1]} : vector<2x64xf32> to vector<2x32xf32>
    %76 = vector.extract_strided_slice %67 {offsets = [0, 64], sizes = [2, 32], strides = [1, 1]} : vector<2x128xf32> to vector<2x32xf32>
    %77 = math.tanh %76 : vector<2x32xf32>
    %78 = vector.extract_strided_slice %67 {offsets = [0, 96], sizes = [2, 32], strides = [1, 1]} : vector<2x128xf32> to vector<2x32xf32>
    %79 = arith.negf %78 : vector<2x32xf32>
    %80 = math.exp %79 : vector<2x32xf32>
    %cst_28 = arith.constant 1.000000e+00 : f32
    %81 = vector.broadcast %cst_28 : f32 to vector<2x32xf32>
    %82 = arith.addf %81, %80 : vector<2x32xf32>
    %83 = arith.divf %81, %82 : vector<2x32xf32>
    %84 = arith.mulf %75, %30 : vector<2x32xf32>
    %85 = arith.mulf %74, %77 : vector<2x32xf32>
    %86 = arith.addf %84, %85 : vector<2x32xf32>
    %87 = math.tanh %86 : vector<2x32xf32>
    %88 = arith.mulf %83, %87 : vector<2x32xf32>
    %cst_29 = arith.constant dense<0.000000e+00> : vector<2xf32>
    %89 = vector.multi_reduction <add>, %88, %cst_29 [1] : vector<2x32xf32> to vector<2xf32>
    %90 = vector.shape_cast %89 : vector<2xf32> to vector<2x1xf32>
    %cst_30 = arith.constant 3.200000e+01 : f32
    %91 = vector.broadcast %cst_30 : f32 to vector<2x1xf32>
    %92 = arith.divf %90, %91 : vector<2x1xf32>
    %93 = vector.broadcast %92 : vector<2x1xf32> to vector<2x32xf32>
    %94 = arith.subf %88, %93 : vector<2x32xf32>
    %95 = arith.mulf %94, %94 : vector<2x32xf32>
    %cst_31 = arith.constant dense<0.000000e+00> : vector<2xf32>
    %96 = vector.multi_reduction <add>, %95, %cst_31 [1] : vector<2x32xf32> to vector<2xf32>
    %97 = vector.shape_cast %96 : vector<2xf32> to vector<2x1xf32>
    %cst_32 = arith.constant 3.200000e+01 : f32
    %98 = vector.broadcast %cst_32 : f32 to vector<2x1xf32>
    %99 = arith.divf %97, %98 : vector<2x1xf32>
    %100 = vector.broadcast %92 : vector<2x1xf32> to vector<2x32xf32>
    %101 = arith.subf %88, %100 : vector<2x32xf32>
    %cst_33 = arith.constant 9.99999974E-6 : f32
    %102 = vector.broadcast %cst_33 : f32 to vector<2x1xf32>
    %103 = arith.addf %99, %102 : vector<2x1xf32>
    %104 = math.rsqrt %103 : vector<2x1xf32>
    %105 = vector.broadcast %104 : vector<2x1xf32> to vector<2x32xf32>
    %106 = arith.mulf %101, %105 : vector<2x32xf32>
    %107 = vector.broadcast %4 : vector<1x32xf32> to vector<2x32xf32>
    %108 = arith.mulf %106, %107 : vector<2x32xf32>
    %109 = vector.broadcast %5 : vector<1x32xf32> to vector<2x32xf32>
    %110 = arith.addf %108, %109 : vector<2x32xf32>
    %111 = arith.negf %110 : vector<2x32xf32>
    %112 = math.exp %111 : vector<2x32xf32>
    %cst_34 = arith.constant 1.000000e+00 : f32
    %113 = vector.broadcast %cst_34 : f32 to vector<2x32xf32>
    %114 = arith.addf %113, %112 : vector<2x32xf32>
    %115 = arith.divf %113, %114 : vector<2x32xf32>
    %116 = arith.mulf %110, %115 : vector<2x32xf32>
    %c0_35 = arith.constant 0 : index
    %c1_36 = arith.constant 1 : index
    %c0_37 = arith.constant 0 : index
    %117 = vector.load %arg6[%c0_35, %c1_36, %c0_37] : memref<2x8x32xf32, #tpu.memory_space<vmem>>, vector<2x1x32xf32>
    %118 = vector.shape_cast %117 : vector<2x1x32xf32> to vector<2x32xf32>
    %119 = vector.shape_cast %116 : vector<2x32xf32> to vector<2x1x32xf32>
    tpu.vector_store %arg6[%c0_35, %c1_36, %c0_37], %119 {strides = array<i32>} : memref<2x8x32xf32, #tpu.memory_space<vmem>>, vector<2x1x32xf32>,
    %c0_38 = arith.constant 0 : index
    %c2 = arith.constant 2 : index
    %c0_39 = arith.constant 0 : index
    %120 = vector.load %arg2[%c0_38, %c2, %c0_39] : memref<2x8x128xf32, #tpu.memory_space<vmem>>, vector<2x1x128xf32>
    %121 = vector.shape_cast %120 : vector<2x1x128xf32> to vector<2x128xf32>
    %cst_40 = arith.constant dense<0.000000e+00> : vector<2x128xf32>
    %122 = tpu.matmul %88, %3, %cst_40 {dimension_numbers = #tpu.dot_dimension_numbers<[1], [0], [0], [1], [0, 0, 1, 1], [], []>} : vector<2x32xf32>, vector<32x128xf32>, vector<2x128xf32> -> vector<2x128xf32>
    %123 = arith.addf %121, %122 : vector<2x128xf32>
    %124 = vector.extract_strided_slice %123 {offsets = [0, 0], sizes = [2, 64], strides = [1, 1]} : vector<2x128xf32> to vector<2x64xf32>
    %125 = arith.negf %124 : vector<2x64xf32>
    %126 = math.exp %125 : vector<2x64xf32>
    %cst_41 = arith.constant 1.000000e+00 : f32
    %127 = vector.broadcast %cst_41 : f32 to vector<2x64xf32>
    %128 = arith.addf %127, %126 : vector<2x64xf32>
    %129 = arith.divf %127, %128 : vector<2x64xf32>
    %130 = vector.extract_strided_slice %129 {offsets = [0, 0], sizes = [2, 32], strides = [1, 1]} : vector<2x64xf32> to vector<2x32xf32>
    %131 = vector.extract_strided_slice %129 {offsets = [0, 32], sizes = [2, 32], strides = [1, 1]} : vector<2x64xf32> to vector<2x32xf32>
    %132 = vector.extract_strided_slice %123 {offsets = [0, 64], sizes = [2, 32], strides = [1, 1]} : vector<2x128xf32> to vector<2x32xf32>
    %133 = math.tanh %132 : vector<2x32xf32>
    %134 = vector.extract_strided_slice %123 {offsets = [0, 96], sizes = [2, 32], strides = [1, 1]} : vector<2x128xf32> to vector<2x32xf32>
    %135 = arith.negf %134 : vector<2x32xf32>
    %136 = math.exp %135 : vector<2x32xf32>
    %cst_42 = arith.constant 1.000000e+00 : f32
    %137 = vector.broadcast %cst_42 : f32 to vector<2x32xf32>
    %138 = arith.addf %137, %136 : vector<2x32xf32>
    %139 = arith.divf %137, %138 : vector<2x32xf32>
    %140 = arith.mulf %131, %86 : vector<2x32xf32>
    %141 = arith.mulf %130, %133 : vector<2x32xf32>
    %142 = arith.addf %140, %141 : vector<2x32xf32>
    %143 = math.tanh %142 : vector<2x32xf32>
    %144 = arith.mulf %139, %143 : vector<2x32xf32>
    %cst_43 = arith.constant dense<0.000000e+00> : vector<2xf32>
    %145 = vector.multi_reduction <add>, %144, %cst_43 [1] : vector<2x32xf32> to vector<2xf32>
    %146 = vector.shape_cast %145 : vector<2xf32> to vector<2x1xf32>
    %cst_44 = arith.constant 3.200000e+01 : f32
    %147 = vector.broadcast %cst_44 : f32 to vector<2x1xf32>
    %148 = arith.divf %146, %147 : vector<2x1xf32>
    %149 = vector.broadcast %148 : vector<2x1xf32> to vector<2x32xf32>
    %150 = arith.subf %144, %149 : vector<2x32xf32>
    %151 = arith.mulf %150, %150 : vector<2x32xf32>
    %cst_45 = arith.constant dense<0.000000e+00> : vector<2xf32>
    %152 = vector.multi_reduction <add>, %151, %cst_45 [1] : vector<2x32xf32> to vector<2xf32>
    %153 = vector.shape_cast %152 : vector<2xf32> to vector<2x1xf32>
    %cst_46 = arith.constant 3.200000e+01 : f32
    %154 = vector.broadcast %cst_46 : f32 to vector<2x1xf32>
    %155 = arith.divf %153, %154 : vector<2x1xf32>
    %156 = vector.broadcast %148 : vector<2x1xf32> to vector<2x32xf32>
    %157 = arith.subf %144, %156 : vector<2x32xf32>
    %cst_47 = arith.constant 9.99999974E-6 : f32
    %158 = vector.broadcast %cst_47 : f32 to vector<2x1xf32>
    %159 = arith.addf %155, %158 : vector<2x1xf32>
    %160 = math.rsqrt %159 : vector<2x1xf32>
    %161 = vector.broadcast %160 : vector<2x1xf32> to vector<2x32xf32>
    %162 = arith.mulf %157, %161 : vector<2x32xf32>
    %163 = vector.broadcast %4 : vector<1x32xf32> to vector<2x32xf32>
    %164 = arith.mulf %162, %163 : vector<2x32xf32>
    %165 = vector.broadcast %5 : vector<1x32xf32> to vector<2x32xf32>
    %166 = arith.addf %164, %165 : vector<2x32xf32>
    %167 = arith.negf %166 : vector<2x32xf32>
    %168 = math.exp %167 : vector<2x32xf32>
    %cst_48 = arith.constant 1.000000e+00 : f32
    %169 = vector.broadcast %cst_48 : f32 to vector<2x32xf32>
    %170 = arith.addf %169, %168 : vector<2x32xf32>
    %171 = arith.divf %169, %170 : vector<2x32xf32>
    %172 = arith.mulf %166, %171 : vector<2x32xf32>
    %c0_49 = arith.constant 0 : index
    %c2_50 = arith.constant 2 : index
    %c0_51 = arith.constant 0 : index
    %173 = vector.load %arg6[%c0_49, %c2_50, %c0_51] : memref<2x8x32xf32, #tpu.memory_space<vmem>>, vector<2x1x32xf32>
    %174 = vector.shape_cast %173 : vector<2x1x32xf32> to vector<2x32xf32>
    %175 = vector.shape_cast %172 : vector<2x32xf32> to vector<2x1x32xf32>
    tpu.vector_store %arg6[%c0_49, %c2_50, %c0_51], %175 {strides = array<i32>} : memref<2x8x32xf32, #tpu.memory_space<vmem>>, vector<2x1x32xf32>,
    %c0_52 = arith.constant 0 : index
    %c3 = arith.constant 3 : index
    %c0_53 = arith.constant 0 : index
    %176 = vector.load %arg2[%c0_52, %c3, %c0_53] : memref<2x8x128xf32, #tpu.memory_space<vmem>>, vector<2x1x128xf32>
    %177 = vector.shape_cast %176 : vector<2x1x128xf32> to vector<2x128xf32>
    %cst_54 = arith.constant dense<0.000000e+00> : vector<2x128xf32>
    %178 = tpu.matmul %144, %3, %cst_54 {dimension_numbers = #tpu.dot_dimension_numbers<[1], [0], [0], [1], [0, 0, 1, 1], [], []>} : vector<2x32xf32>, vector<32x128xf32>, vector<2x128xf32> -> vector<2x128xf32>
    %179 = arith.addf %177, %178 : vector<2x128xf32>
    %180 = vector.extract_strided_slice %179 {offsets = [0, 0], sizes = [2, 64], strides = [1, 1]} : vector<2x128xf32> to vector<2x64xf32>
    %181 = arith.negf %180 : vector<2x64xf32>
    %182 = math.exp %181 : vector<2x64xf32>
    %cst_55 = arith.constant 1.000000e+00 : f32
    %183 = vector.broadcast %cst_55 : f32 to vector<2x64xf32>
    %184 = arith.addf %183, %182 : vector<2x64xf32>
    %185 = arith.divf %183, %184 : vector<2x64xf32>
    %186 = vector.extract_strided_slice %185 {offsets = [0, 0], sizes = [2, 32], strides = [1, 1]} : vector<2x64xf32> to vector<2x32xf32>
    %187 = vector.extract_strided_slice %185 {offsets = [0, 32], sizes = [2, 32], strides = [1, 1]} : vector<2x64xf32> to vector<2x32xf32>
    %188 = vector.extract_strided_slice %179 {offsets = [0, 64], sizes = [2, 32], strides = [1, 1]} : vector<2x128xf32> to vector<2x32xf32>
    %189 = math.tanh %188 : vector<2x32xf32>
    %190 = vector.extract_strided_slice %179 {offsets = [0, 96], sizes = [2, 32], strides = [1, 1]} : vector<2x128xf32> to vector<2x32xf32>
    %191 = arith.negf %190 : vector<2x32xf32>
    %192 = math.exp %191 : vector<2x32xf32>
    %cst_56 = arith.constant 1.000000e+00 : f32
    %193 = vector.broadcast %cst_56 : f32 to vector<2x32xf32>
    %194 = arith.addf %193, %192 : vector<2x32xf32>
    %195 = arith.divf %193, %194 : vector<2x32xf32>
    %196 = arith.mulf %187, %142 : vector<2x32xf32>
    %197 = arith.mulf %186, %189 : vector<2x32xf32>
    %198 = arith.addf %196, %197 : vector<2x32xf32>
    %199 = math.tanh %198 : vector<2x32xf32>
    %200 = arith.mulf %195, %199 : vector<2x32xf32>
    %cst_57 = arith.constant dense<0.000000e+00> : vector<2xf32>
    %201 = vector.multi_reduction <add>, %200, %cst_57 [1] : vector<2x32xf32> to vector<2xf32>
    %202 = vector.shape_cast %201 : vector<2xf32> to vector<2x1xf32>
    %cst_58 = arith.constant 3.200000e+01 : f32
    %203 = vector.broadcast %cst_58 : f32 to vector<2x1xf32>
    %204 = arith.divf %202, %203 : vector<2x1xf32>
    %205 = vector.broadcast %204 : vector<2x1xf32> to vector<2x32xf32>
    %206 = arith.subf %200, %205 : vector<2x32xf32>
    %207 = arith.mulf %206, %206 : vector<2x32xf32>
    %cst_59 = arith.constant dense<0.000000e+00> : vector<2xf32>
    %208 = vector.multi_reduction <add>, %207, %cst_59 [1] : vector<2x32xf32> to vector<2xf32>
    %209 = vector.shape_cast %208 : vector<2xf32> to vector<2x1xf32>
    %cst_60 = arith.constant 3.200000e+01 : f32
    %210 = vector.broadcast %cst_60 : f32 to vector<2x1xf32>
    %211 = arith.divf %209, %210 : vector<2x1xf32>
    %212 = vector.broadcast %204 : vector<2x1xf32> to vector<2x32xf32>
    %213 = arith.subf %200, %212 : vector<2x32xf32>
    %cst_61 = arith.constant 9.99999974E-6 : f32
    %214 = vector.broadcast %cst_61 : f32 to vector<2x1xf32>
    %215 = arith.addf %211, %214 : vector<2x1xf32>
    %216 = math.rsqrt %215 : vector<2x1xf32>
    %217 = vector.broadcast %216 : vector<2x1xf32> to vector<2x32xf32>
    %218 = arith.mulf %213, %217 : vector<2x32xf32>
    %219 = vector.broadcast %4 : vector<1x32xf32> to vector<2x32xf32>
    %220 = arith.mulf %218, %219 : vector<2x32xf32>
    %221 = vector.broadcast %5 : vector<1x32xf32> to vector<2x32xf32>
    %222 = arith.addf %220, %221 : vector<2x32xf32>
    %223 = arith.negf %222 : vector<2x32xf32>
    %224 = math.exp %223 : vector<2x32xf32>
    %cst_62 = arith.constant 1.000000e+00 : f32
    %225 = vector.broadcast %cst_62 : f32 to vector<2x32xf32>
    %226 = arith.addf %225, %224 : vector<2x32xf32>
    %227 = arith.divf %225, %226 : vector<2x32xf32>
    %228 = arith.mulf %222, %227 : vector<2x32xf32>
    %c0_63 = arith.constant 0 : index
    %c3_64 = arith.constant 3 : index
    %c0_65 = arith.constant 0 : index
    %229 = vector.load %arg6[%c0_63, %c3_64, %c0_65] : memref<2x8x32xf32, #tpu.memory_space<vmem>>, vector<2x1x32xf32>
    %230 = vector.shape_cast %229 : vector<2x1x32xf32> to vector<2x32xf32>
    %231 = vector.shape_cast %228 : vector<2x32xf32> to vector<2x1x32xf32>
    tpu.vector_store %arg6[%c0_63, %c3_64, %c0_65], %231 {strides = array<i32>} : memref<2x8x32xf32, #tpu.memory_space<vmem>>, vector<2x1x32xf32>,
    %c0_66 = arith.constant 0 : index
    %c4 = arith.constant 4 : index
    %c0_67 = arith.constant 0 : index
    %232 = vector.load %arg2[%c0_66, %c4, %c0_67] : memref<2x8x128xf32, #tpu.memory_space<vmem>>, vector<2x1x128xf32>
    %233 = vector.shape_cast %232 : vector<2x1x128xf32> to vector<2x128xf32>
    %cst_68 = arith.constant dense<0.000000e+00> : vector<2x128xf32>
    %234 = tpu.matmul %200, %3, %cst_68 {dimension_numbers = #tpu.dot_dimension_numbers<[1], [0], [0], [1], [0, 0, 1, 1], [], []>} : vector<2x32xf32>, vector<32x128xf32>, vector<2x128xf32> -> vector<2x128xf32>
    %235 = arith.addf %233, %234 : vector<2x128xf32>
    %236 = vector.extract_strided_slice %235 {offsets = [0, 0], sizes = [2, 64], strides = [1, 1]} : vector<2x128xf32> to vector<2x64xf32>
    %237 = arith.negf %236 : vector<2x64xf32>
    %238 = math.exp %237 : vector<2x64xf32>
    %cst_69 = arith.constant 1.000000e+00 : f32
    %239 = vector.broadcast %cst_69 : f32 to vector<2x64xf32>
    %240 = arith.addf %239, %238 : vector<2x64xf32>
    %241 = arith.divf %239, %240 : vector<2x64xf32>
    %242 = vector.extract_strided_slice %241 {offsets = [0, 0], sizes = [2, 32], strides = [1, 1]} : vector<2x64xf32> to vector<2x32xf32>
    %243 = vector.extract_strided_slice %241 {offsets = [0, 32], sizes = [2, 32], strides = [1, 1]} : vector<2x64xf32> to vector<2x32xf32>
    %244 = vector.extract_strided_slice %235 {offsets = [0, 64], sizes = [2, 32], strides = [1, 1]} : vector<2x128xf32> to vector<2x32xf32>
    %245 = math.tanh %244 : vector<2x32xf32>
    %246 = vector.extract_strided_slice %235 {offsets = [0, 96], sizes = [2, 32], strides = [1, 1]} : vector<2x128xf32> to vector<2x32xf32>
    %247 = arith.negf %246 : vector<2x32xf32>
    %248 = math.exp %247 : vector<2x32xf32>
    %cst_70 = arith.constant 1.000000e+00 : f32
    %249 = vector.broadcast %cst_70 : f32 to vector<2x32xf32>
    %250 = arith.addf %249, %248 : vector<2x32xf32>
    %251 = arith.divf %249, %250 : vector<2x32xf32>
    %252 = arith.mulf %243, %198 : vector<2x32xf32>
    %253 = arith.mulf %242, %245 : vector<2x32xf32>
    %254 = arith.addf %252, %253 : vector<2x32xf32>
    %255 = math.tanh %254 : vector<2x32xf32>
    %256 = arith.mulf %251, %255 : vector<2x32xf32>
    %cst_71 = arith.constant dense<0.000000e+00> : vector<2xf32>
    %257 = vector.multi_reduction <add>, %256, %cst_71 [1] : vector<2x32xf32> to vector<2xf32>
    %258 = vector.shape_cast %257 : vector<2xf32> to vector<2x1xf32>
    %cst_72 = arith.constant 3.200000e+01 : f32
    %259 = vector.broadcast %cst_72 : f32 to vector<2x1xf32>
    %260 = arith.divf %258, %259 : vector<2x1xf32>
    %261 = vector.broadcast %260 : vector<2x1xf32> to vector<2x32xf32>
    %262 = arith.subf %256, %261 : vector<2x32xf32>
    %263 = arith.mulf %262, %262 : vector<2x32xf32>
    %cst_73 = arith.constant dense<0.000000e+00> : vector<2xf32>
    %264 = vector.multi_reduction <add>, %263, %cst_73 [1] : vector<2x32xf32> to vector<2xf32>
    %265 = vector.shape_cast %264 : vector<2xf32> to vector<2x1xf32>
    %cst_74 = arith.constant 3.200000e+01 : f32
    %266 = vector.broadcast %cst_74 : f32 to vector<2x1xf32>
    %267 = arith.divf %265, %266 : vector<2x1xf32>
    %268 = vector.broadcast %260 : vector<2x1xf32> to vector<2x32xf32>
    %269 = arith.subf %256, %268 : vector<2x32xf32>
    %cst_75 = arith.constant 9.99999974E-6 : f32
    %270 = vector.broadcast %cst_75 : f32 to vector<2x1xf32>
    %271 = arith.addf %267, %270 : vector<2x1xf32>
    %272 = math.rsqrt %271 : vector<2x1xf32>
    %273 = vector.broadcast %272 : vector<2x1xf32> to vector<2x32xf32>
    %274 = arith.mulf %269, %273 : vector<2x32xf32>
    %275 = vector.broadcast %4 : vector<1x32xf32> to vector<2x32xf32>
    %276 = arith.mulf %274, %275 : vector<2x32xf32>
    %277 = vector.broadcast %5 : vector<1x32xf32> to vector<2x32xf32>
    %278 = arith.addf %276, %277 : vector<2x32xf32>
    %279 = arith.negf %278 : vector<2x32xf32>
    %280 = math.exp %279 : vector<2x32xf32>
    %cst_76 = arith.constant 1.000000e+00 : f32
    %281 = vector.broadcast %cst_76 : f32 to vector<2x32xf32>
    %282 = arith.addf %281, %280 : vector<2x32xf32>
    %283 = arith.divf %281, %282 : vector<2x32xf32>
    %284 = arith.mulf %278, %283 : vector<2x32xf32>
    %c0_77 = arith.constant 0 : index
    %c4_78 = arith.constant 4 : index
    %c0_79 = arith.constant 0 : index
    %285 = vector.load %arg6[%c0_77, %c4_78, %c0_79] : memref<2x8x32xf32, #tpu.memory_space<vmem>>, vector<2x1x32xf32>
    %286 = vector.shape_cast %285 : vector<2x1x32xf32> to vector<2x32xf32>
    %287 = vector.shape_cast %284 : vector<2x32xf32> to vector<2x1x32xf32>
    tpu.vector_store %arg6[%c0_77, %c4_78, %c0_79], %287 {strides = array<i32>} : memref<2x8x32xf32, #tpu.memory_space<vmem>>, vector<2x1x32xf32>,
    %c0_80 = arith.constant 0 : index
    %c5 = arith.constant 5 : index
    %c0_81 = arith.constant 0 : index
    %288 = vector.load %arg2[%c0_80, %c5, %c0_81] : memref<2x8x128xf32, #tpu.memory_space<vmem>>, vector<2x1x128xf32>
    %289 = vector.shape_cast %288 : vector<2x1x128xf32> to vector<2x128xf32>
    %cst_82 = arith.constant dense<0.000000e+00> : vector<2x128xf32>
    %290 = tpu.matmul %256, %3, %cst_82 {dimension_numbers = #tpu.dot_dimension_numbers<[1], [0], [0], [1], [0, 0, 1, 1], [], []>} : vector<2x32xf32>, vector<32x128xf32>, vector<2x128xf32> -> vector<2x128xf32>
    %291 = arith.addf %289, %290 : vector<2x128xf32>
    %292 = vector.extract_strided_slice %291 {offsets = [0, 0], sizes = [2, 64], strides = [1, 1]} : vector<2x128xf32> to vector<2x64xf32>
    %293 = arith.negf %292 : vector<2x64xf32>
    %294 = math.exp %293 : vector<2x64xf32>
    %cst_83 = arith.constant 1.000000e+00 : f32
    %295 = vector.broadcast %cst_83 : f32 to vector<2x64xf32>
    %296 = arith.addf %295, %294 : vector<2x64xf32>
    %297 = arith.divf %295, %296 : vector<2x64xf32>
    %298 = vector.extract_strided_slice %297 {offsets = [0, 0], sizes = [2, 32], strides = [1, 1]} : vector<2x64xf32> to vector<2x32xf32>
    %299 = vector.extract_strided_slice %297 {offsets = [0, 32], sizes = [2, 32], strides = [1, 1]} : vector<2x64xf32> to vector<2x32xf32>
    %300 = vector.extract_strided_slice %291 {offsets = [0, 64], sizes = [2, 32], strides = [1, 1]} : vector<2x128xf32> to vector<2x32xf32>
    %301 = math.tanh %300 : vector<2x32xf32>
    %302 = vector.extract_strided_slice %291 {offsets = [0, 96], sizes = [2, 32], strides = [1, 1]} : vector<2x128xf32> to vector<2x32xf32>
    %303 = arith.negf %302 : vector<2x32xf32>
    %304 = math.exp %303 : vector<2x32xf32>
    %cst_84 = arith.constant 1.000000e+00 : f32
    %305 = vector.broadcast %cst_84 : f32 to vector<2x32xf32>
    %306 = arith.addf %305, %304 : vector<2x32xf32>
    %307 = arith.divf %305, %306 : vector<2x32xf32>
    %308 = arith.mulf %299, %254 : vector<2x32xf32>
    %309 = arith.mulf %298, %301 : vector<2x32xf32>
    %310 = arith.addf %308, %309 : vector<2x32xf32>
    %311 = math.tanh %310 : vector<2x32xf32>
    %312 = arith.mulf %307, %311 : vector<2x32xf32>
    %cst_85 = arith.constant dense<0.000000e+00> : vector<2xf32>
    %313 = vector.multi_reduction <add>, %312, %cst_85 [1] : vector<2x32xf32> to vector<2xf32>
    %314 = vector.shape_cast %313 : vector<2xf32> to vector<2x1xf32>
    %cst_86 = arith.constant 3.200000e+01 : f32
    %315 = vector.broadcast %cst_86 : f32 to vector<2x1xf32>
    %316 = arith.divf %314, %315 : vector<2x1xf32>
    %317 = vector.broadcast %316 : vector<2x1xf32> to vector<2x32xf32>
    %318 = arith.subf %312, %317 : vector<2x32xf32>
    %319 = arith.mulf %318, %318 : vector<2x32xf32>
    %cst_87 = arith.constant dense<0.000000e+00> : vector<2xf32>
    %320 = vector.multi_reduction <add>, %319, %cst_87 [1] : vector<2x32xf32> to vector<2xf32>
    %321 = vector.shape_cast %320 : vector<2xf32> to vector<2x1xf32>
    %cst_88 = arith.constant 3.200000e+01 : f32
    %322 = vector.broadcast %cst_88 : f32 to vector<2x1xf32>
    %323 = arith.divf %321, %322 : vector<2x1xf32>
    %324 = vector.broadcast %316 : vector<2x1xf32> to vector<2x32xf32>
    %325 = arith.subf %312, %324 : vector<2x32xf32>
    %cst_89 = arith.constant 9.99999974E-6 : f32
    %326 = vector.broadcast %cst_89 : f32 to vector<2x1xf32>
    %327 = arith.addf %323, %326 : vector<2x1xf32>
    %328 = math.rsqrt %327 : vector<2x1xf32>
    %329 = vector.broadcast %328 : vector<2x1xf32> to vector<2x32xf32>
    %330 = arith.mulf %325, %329 : vector<2x32xf32>
    %331 = vector.broadcast %4 : vector<1x32xf32> to vector<2x32xf32>
    %332 = arith.mulf %330, %331 : vector<2x32xf32>
    %333 = vector.broadcast %5 : vector<1x32xf32> to vector<2x32xf32>
    %334 = arith.addf %332, %333 : vector<2x32xf32>
    %335 = arith.negf %334 : vector<2x32xf32>
    %336 = math.exp %335 : vector<2x32xf32>
    %cst_90 = arith.constant 1.000000e+00 : f32
    %337 = vector.broadcast %cst_90 : f32 to vector<2x32xf32>
    %338 = arith.addf %337, %336 : vector<2x32xf32>
    %339 = arith.divf %337, %338 : vector<2x32xf32>
    %340 = arith.mulf %334, %339 : vector<2x32xf32>
    %c0_91 = arith.constant 0 : index
    %c5_92 = arith.constant 5 : index
    %c0_93 = arith.constant 0 : index
    %341 = vector.load %arg6[%c0_91, %c5_92, %c0_93] : memref<2x8x32xf32, #tpu.memory_space<vmem>>, vector<2x1x32xf32>
    %342 = vector.shape_cast %341 : vector<2x1x32xf32> to vector<2x32xf32>
    %343 = vector.shape_cast %340 : vector<2x32xf32> to vector<2x1x32xf32>
    tpu.vector_store %arg6[%c0_91, %c5_92, %c0_93], %343 {strides = array<i32>} : memref<2x8x32xf32, #tpu.memory_space<vmem>>, vector<2x1x32xf32>,
    %c0_94 = arith.constant 0 : index
    %c6 = arith.constant 6 : index
    %c0_95 = arith.constant 0 : index
    %344 = vector.load %arg2[%c0_94, %c6, %c0_95] : memref<2x8x128xf32, #tpu.memory_space<vmem>>, vector<2x1x128xf32>
    %345 = vector.shape_cast %344 : vector<2x1x128xf32> to vector<2x128xf32>
    %cst_96 = arith.constant dense<0.000000e+00> : vector<2x128xf32>
    %346 = tpu.matmul %312, %3, %cst_96 {dimension_numbers = #tpu.dot_dimension_numbers<[1], [0], [0], [1], [0, 0, 1, 1], [], []>} : vector<2x32xf32>, vector<32x128xf32>, vector<2x128xf32> -> vector<2x128xf32>
    %347 = arith.addf %345, %346 : vector<2x128xf32>
    %348 = vector.extract_strided_slice %347 {offsets = [0, 0], sizes = [2, 64], strides = [1, 1]} : vector<2x128xf32> to vector<2x64xf32>
    %349 = arith.negf %348 : vector<2x64xf32>
    %350 = math.exp %349 : vector<2x64xf32>
    %cst_97 = arith.constant 1.000000e+00 : f32
    %351 = vector.broadcast %cst_97 : f32 to vector<2x64xf32>
    %352 = arith.addf %351, %350 : vector<2x64xf32>
    %353 = arith.divf %351, %352 : vector<2x64xf32>
    %354 = vector.extract_strided_slice %353 {offsets = [0, 0], sizes = [2, 32], strides = [1, 1]} : vector<2x64xf32> to vector<2x32xf32>
    %355 = vector.extract_strided_slice %353 {offsets = [0, 32], sizes = [2, 32], strides = [1, 1]} : vector<2x64xf32> to vector<2x32xf32>
    %356 = vector.extract_strided_slice %347 {offsets = [0, 64], sizes = [2, 32], strides = [1, 1]} : vector<2x128xf32> to vector<2x32xf32>
    %357 = math.tanh %356 : vector<2x32xf32>
    %358 = vector.extract_strided_slice %347 {offsets = [0, 96], sizes = [2, 32], strides = [1, 1]} : vector<2x128xf32> to vector<2x32xf32>
    %359 = arith.negf %358 : vector<2x32xf32>
    %360 = math.exp %359 : vector<2x32xf32>
    %cst_98 = arith.constant 1.000000e+00 : f32
    %361 = vector.broadcast %cst_98 : f32 to vector<2x32xf32>
    %362 = arith.addf %361, %360 : vector<2x32xf32>
    %363 = arith.divf %361, %362 : vector<2x32xf32>
    %364 = arith.mulf %355, %310 : vector<2x32xf32>
    %365 = arith.mulf %354, %357 : vector<2x32xf32>
    %366 = arith.addf %364, %365 : vector<2x32xf32>
    %367 = math.tanh %366 : vector<2x32xf32>
    %368 = arith.mulf %363, %367 : vector<2x32xf32>
    %cst_99 = arith.constant dense<0.000000e+00> : vector<2xf32>
    %369 = vector.multi_reduction <add>, %368, %cst_99 [1] : vector<2x32xf32> to vector<2xf32>
    %370 = vector.shape_cast %369 : vector<2xf32> to vector<2x1xf32>
    %cst_100 = arith.constant 3.200000e+01 : f32
    %371 = vector.broadcast %cst_100 : f32 to vector<2x1xf32>
    %372 = arith.divf %370, %371 : vector<2x1xf32>
    %373 = vector.broadcast %372 : vector<2x1xf32> to vector<2x32xf32>
    %374 = arith.subf %368, %373 : vector<2x32xf32>
    %375 = arith.mulf %374, %374 : vector<2x32xf32>
    %cst_101 = arith.constant dense<0.000000e+00> : vector<2xf32>
    %376 = vector.multi_reduction <add>, %375, %cst_101 [1] : vector<2x32xf32> to vector<2xf32>
    %377 = vector.shape_cast %376 : vector<2xf32> to vector<2x1xf32>
    %cst_102 = arith.constant 3.200000e+01 : f32
    %378 = vector.broadcast %cst_102 : f32 to vector<2x1xf32>
    %379 = arith.divf %377, %378 : vector<2x1xf32>
    %380 = vector.broadcast %372 : vector<2x1xf32> to vector<2x32xf32>
    %381 = arith.subf %368, %380 : vector<2x32xf32>
    %cst_103 = arith.constant 9.99999974E-6 : f32
    %382 = vector.broadcast %cst_103 : f32 to vector<2x1xf32>
    %383 = arith.addf %379, %382 : vector<2x1xf32>
    %384 = math.rsqrt %383 : vector<2x1xf32>
    %385 = vector.broadcast %384 : vector<2x1xf32> to vector<2x32xf32>
    %386 = arith.mulf %381, %385 : vector<2x32xf32>
    %387 = vector.broadcast %4 : vector<1x32xf32> to vector<2x32xf32>
    %388 = arith.mulf %386, %387 : vector<2x32xf32>
    %389 = vector.broadcast %5 : vector<1x32xf32> to vector<2x32xf32>
    %390 = arith.addf %388, %389 : vector<2x32xf32>
    %391 = arith.negf %390 : vector<2x32xf32>
    %392 = math.exp %391 : vector<2x32xf32>
    %cst_104 = arith.constant 1.000000e+00 : f32
    %393 = vector.broadcast %cst_104 : f32 to vector<2x32xf32>
    %394 = arith.addf %393, %392 : vector<2x32xf32>
    %395 = arith.divf %393, %394 : vector<2x32xf32>
    %396 = arith.mulf %390, %395 : vector<2x32xf32>
    %c0_105 = arith.constant 0 : index
    %c6_106 = arith.constant 6 : index
    %c0_107 = arith.constant 0 : index
    %397 = vector.load %arg6[%c0_105, %c6_106, %c0_107] : memref<2x8x32xf32, #tpu.memory_space<vmem>>, vector<2x1x32xf32>
    %398 = vector.shape_cast %397 : vector<2x1x32xf32> to vector<2x32xf32>
    %399 = vector.shape_cast %396 : vector<2x32xf32> to vector<2x1x32xf32>
    tpu.vector_store %arg6[%c0_105, %c6_106, %c0_107], %399 {strides = array<i32>} : memref<2x8x32xf32, #tpu.memory_space<vmem>>, vector<2x1x32xf32>,
    %c0_108 = arith.constant 0 : index
    %c7 = arith.constant 7 : index
    %c0_109 = arith.constant 0 : index
    %400 = vector.load %arg2[%c0_108, %c7, %c0_109] : memref<2x8x128xf32, #tpu.memory_space<vmem>>, vector<2x1x128xf32>
    %401 = vector.shape_cast %400 : vector<2x1x128xf32> to vector<2x128xf32>
    %cst_110 = arith.constant dense<0.000000e+00> : vector<2x128xf32>
    %402 = tpu.matmul %368, %3, %cst_110 {dimension_numbers = #tpu.dot_dimension_numbers<[1], [0], [0], [1], [0, 0, 1, 1], [], []>} : vector<2x32xf32>, vector<32x128xf32>, vector<2x128xf32> -> vector<2x128xf32>
    %403 = arith.addf %401, %402 : vector<2x128xf32>
    %404 = vector.extract_strided_slice %403 {offsets = [0, 0], sizes = [2, 64], strides = [1, 1]} : vector<2x128xf32> to vector<2x64xf32>
    %405 = arith.negf %404 : vector<2x64xf32>
    %406 = math.exp %405 : vector<2x64xf32>
    %cst_111 = arith.constant 1.000000e+00 : f32
    %407 = vector.broadcast %cst_111 : f32 to vector<2x64xf32>
    %408 = arith.addf %407, %406 : vector<2x64xf32>
    %409 = arith.divf %407, %408 : vector<2x64xf32>
    %410 = vector.extract_strided_slice %409 {offsets = [0, 0], sizes = [2, 32], strides = [1, 1]} : vector<2x64xf32> to vector<2x32xf32>
    %411 = vector.extract_strided_slice %409 {offsets = [0, 32], sizes = [2, 32], strides = [1, 1]} : vector<2x64xf32> to vector<2x32xf32>
    %412 = vector.extract_strided_slice %403 {offsets = [0, 64], sizes = [2, 32], strides = [1, 1]} : vector<2x128xf32> to vector<2x32xf32>
    %413 = math.tanh %412 : vector<2x32xf32>
    %414 = vector.extract_strided_slice %403 {offsets = [0, 96], sizes = [2, 32], strides = [1, 1]} : vector<2x128xf32> to vector<2x32xf32>
    %415 = arith.negf %414 : vector<2x32xf32>
    %416 = math.exp %415 : vector<2x32xf32>
    %cst_112 = arith.constant 1.000000e+00 : f32
    %417 = vector.broadcast %cst_112 : f32 to vector<2x32xf32>
    %418 = arith.addf %417, %416 : vector<2x32xf32>
    %419 = arith.divf %417, %418 : vector<2x32xf32>
    %420 = arith.mulf %411, %366 : vector<2x32xf32>
    %421 = arith.mulf %410, %413 : vector<2x32xf32>
    %422 = arith.addf %420, %421 : vector<2x32xf32>
    %423 = math.tanh %422 : vector<2x32xf32>
    %424 = arith.mulf %419, %423 : vector<2x32xf32>
    %cst_113 = arith.constant dense<0.000000e+00> : vector<2xf32>
    %425 = vector.multi_reduction <add>, %424, %cst_113 [1] : vector<2x32xf32> to vector<2xf32>
    %426 = vector.shape_cast %425 : vector<2xf32> to vector<2x1xf32>
    %cst_114 = arith.constant 3.200000e+01 : f32
    %427 = vector.broadcast %cst_114 : f32 to vector<2x1xf32>
    %428 = arith.divf %426, %427 : vector<2x1xf32>
    %429 = vector.broadcast %428 : vector<2x1xf32> to vector<2x32xf32>
    %430 = arith.subf %424, %429 : vector<2x32xf32>
    %431 = arith.mulf %430, %430 : vector<2x32xf32>
    %cst_115 = arith.constant dense<0.000000e+00> : vector<2xf32>
    %432 = vector.multi_reduction <add>, %431, %cst_115 [1] : vector<2x32xf32> to vector<2xf32>
    %433 = vector.shape_cast %432 : vector<2xf32> to vector<2x1xf32>
    %cst_116 = arith.constant 3.200000e+01 : f32
    %434 = vector.broadcast %cst_116 : f32 to vector<2x1xf32>
    %435 = arith.divf %433, %434 : vector<2x1xf32>
    %436 = vector.broadcast %428 : vector<2x1xf32> to vector<2x32xf32>
    %437 = arith.subf %424, %436 : vector<2x32xf32>
    %cst_117 = arith.constant 9.99999974E-6 : f32
    %438 = vector.broadcast %cst_117 : f32 to vector<2x1xf32>
    %439 = arith.addf %435, %438 : vector<2x1xf32>
    %440 = math.rsqrt %439 : vector<2x1xf32>
    %441 = vector.broadcast %440 : vector<2x1xf32> to vector<2x32xf32>
    %442 = arith.mulf %437, %441 : vector<2x32xf32>
    %443 = vector.broadcast %4 : vector<1x32xf32> to vector<2x32xf32>
    %444 = arith.mulf %442, %443 : vector<2x32xf32>
    %445 = vector.broadcast %5 : vector<1x32xf32> to vector<2x32xf32>
    %446 = arith.addf %444, %445 : vector<2x32xf32>
    %447 = arith.negf %446 : vector<2x32xf32>
    %448 = math.exp %447 : vector<2x32xf32>
    %cst_118 = arith.constant 1.000000e+00 : f32
    %449 = vector.broadcast %cst_118 : f32 to vector<2x32xf32>
    %450 = arith.addf %449, %448 : vector<2x32xf32>
    %451 = arith.divf %449, %450 : vector<2x32xf32>
    %452 = arith.mulf %446, %451 : vector<2x32xf32>
    %c0_119 = arith.constant 0 : index
    %c7_120 = arith.constant 7 : index
    %c0_121 = arith.constant 0 : index
    %453 = vector.load %arg6[%c0_119, %c7_120, %c0_121] : memref<2x8x32xf32, #tpu.memory_space<vmem>>, vector<2x1x32xf32>
    %454 = vector.shape_cast %453 : vector<2x1x32xf32> to vector<2x32xf32>
    %455 = vector.shape_cast %452 : vector<2x32xf32> to vector<2x1x32xf32>
    tpu.vector_store %arg6[%c0_119, %c7_120, %c0_121], %455 {strides = array<i32>} : memref<2x8x32xf32, #tpu.memory_space<vmem>>, vector<2x1x32xf32>,
    %c0_122 = arith.constant 0 : index
    %c0_123 = arith.constant 0 : index
    %456 = vector.load %arg7[%c0_122, %c0_123] : memref<2x32xf32, #tpu.memory_space<vmem>>, vector<2x32xf32>
    tpu.vector_store %arg7[%c0_122, %c0_123], %424 {strides = array<i32>} : memref<2x32xf32, #tpu.memory_space<vmem>>, vector<2x32xf32>,
    %c0_124 = arith.constant 0 : index
    %c0_125 = arith.constant 0 : index
    %457 = vector.load %arg8[%c0_124, %c0_125] : memref<2x32xf32, #tpu.memory_space<vmem>>, vector<2x32xf32>
    tpu.vector_store %arg8[%c0_124, %c0_125], %422 {strides = array<i32>} : memref<2x32xf32, #tpu.memory_space<vmem>>, vector<2x32xf32>,
    return
  }
  func.func @transform_0(%arg0: i32, %arg1: i32) -> (i32, i32, i32) {
    %c0_i32 = arith.constant 0 : i32
    %c0_i32_0 = arith.constant 0 : i32
    return %arg0, %arg1, %c0_i32 : i32, i32, i32
  }
  func.func @transform_1(%arg0: i32, %arg1: i32) -> (i32, i32) {
    %c0_i32 = arith.constant 0 : i32
    %c0_i32_0 = arith.constant 0 : i32
    %c0_i32_1 = arith.constant 0 : i32
    return %c0_i32, %c0_i32_0 : i32, i32
  }
  func.func @transform_2(%arg0: i32, %arg1: i32) -> (i32, i32) {
    %c0_i32 = arith.constant 0 : i32
    %c0_i32_0 = arith.constant 0 : i32
    %c0_i32_1 = arith.constant 0 : i32
    return %c0_i32, %c0_i32_0 : i32, i32
  }
  func.func @transform_3(%arg0: i32, %arg1: i32) -> (i32, i32) {
    %c0_i32 = arith.constant 0 : i32
    %c0_i32_0 = arith.constant 0 : i32
    %c0_i32_1 = arith.constant 0 : i32
    return %c0_i32, %c0_i32_0 : i32, i32
  }
  func.func @transform_4(%arg0: i32, %arg1: i32) -> (i32, i32, i32) {
    %c0_i32 = arith.constant 0 : i32
    %c0_i32_0 = arith.constant 0 : i32
    return %arg0, %arg1, %c0_i32 : i32, i32, i32
  }
  func.func @transform_5(%arg0: i32, %arg1: i32) -> (i32, i32) {
    %c0_i32 = arith.constant 0 : i32
    %c0_i32_0 = arith.constant 0 : i32
    return %arg0, %c0_i32 : i32, i32
  }
  func.func @transform_6(%arg0: i32, %arg1: i32) -> (i32, i32) {
    %c0_i32 = arith.constant 0 : i32
    %c0_i32_0 = arith.constant 0 : i32
    return %arg0, %c0_i32 : i32, i32
  }
}

</mosaic_0001>

<llo_original>
// kernel: tpu_custom_call.1
$region0: #{tpu_custom_call.1}
  #allocation0 [shape = 'u32[]', space=smem, size = 0x4, offset = 0x4, fixed_abs, tag = 'smem constant byte address 0x4 - core index']
  #allocation1 [shape = 'u32[144,128]{1,0:T(1,128)}', space=vmem, size = 0x12000, scoped, tag = 'internal scratch']
  %s0 = inlined_call_operand.hbm [shape: f32[2,8,128], index: 0, kind: input, shape index: {}]
  %s1 = inlined_call_operand.hbm [shape: f32[32,128], index: 1, kind: input, shape index: {}]
  %s2 = inlined_call_operand.vmem [shape: f32[1,32], index: 2, kind: input, shape index: {}]
  %s3 = inlined_call_operand.vmem [shape: f32[1,32], index: 3, kind: input, shape index: {}]
  %s4 = inlined_call_operand.hbm [shape: f32[2,8,32], index: 4, kind: output, shape index: {0}]
  %s5 = inlined_call_operand.hbm [shape: f32[2,32], index: 5, kind: output, shape index: {1}]
  %s6 = inlined_call_operand.hbm [shape: f32[2,32], index: 6, kind: output, shape index: {2}]
  %7 = xla_tuple %s4, %s5, %s6
  %s8 = sld [smem:[#allocation0]]
  $region54: #{tpu_custom_call.1} parent=0
    _
  %s10 = ssub.s32 1, %s8
  %s11 = scalar_select 0, %s10, %s8
  $region1: #{tpu_custom_call.1} parent=0
    #allocation2 [shape = 'u8[8192]{0}', space=vmem, size = 0x2000, scoped, tag = 'input window, operand 0, single buffered']
    #allocation3 [shape = 's32[1]{0}', space=sflag, size = 0x4, scoped, tag = 'scoped memory for tpu_custom_call.1']
    #allocation4 [shape = 's32[1]{0}', space=sflag, size = 0x4, scoped, tag = 'scoped memory for tpu_custom_call.1']
    #allocation5 [shape = 'u8[16384]{0}', space=vmem, size = 0x4000, scoped, tag = 'input window, operand 1, single buffered']
    #allocation6 [shape = 's32[1]{0}', space=sflag, size = 0x4, scoped, tag = 'scoped memory for tpu_custom_call.1']
    #allocation7 [shape = 'u8[8192]{0}', space=vmem, size = 0x2000, scoped, tag = 'output window, operand 0, single buffered']
    #allocation8 [shape = 'u8[1024]{0}', space=vmem, size = 0x400, scoped, tag = 'output window, operand 1, single buffered']
    #allocation9 [shape = 's32[1]{0}', space=sflag, size = 0x4, scoped, tag = 'scoped memory for tpu_custom_call.1']
    #allocation10 [shape = 'u8[1024]{0}', space=vmem, size = 0x400, scoped, tag = 'output window, operand 2, single buffered']
    %12 = vsyncpa [#allocation3], 0
    %13 = vsyncpa [#allocation6], 0
    %14 = vsyncpa [#allocation4], 0
    %15 = vsyncpa [#allocation9], 0
    // Predicated region
    $region2: #{tpu_custom_call.1} parent=1 // pred_check
      _
    $region3: #{tpu_custom_call.1} parent=1 // pred_check_branch
      %17 = sbr.rel (0) target = $region5
    $region4: #{tpu_custom_call.1} parent=1 // pred_region
      %s19 = ssub.s32 256, 256
      %20 = vsyncadd [#allocation3], %s19
      %s21 = sshll.u32 [#allocation2], 4
      %s22 = int_to_ptr.vmem [resolvable:$true] %s21
      %27 = dma.hbm_to_vmem [thread:$0]  %s0, 256, %s22, [#allocation3], 128, 128, 8
    $region5: #{tpu_custom_call.1} parent=1 // pred_fallthru
      _
    // Predicated region
    $region6: #{tpu_custom_call.1} parent=1 // pred_check
      _
    $region7: #{tpu_custom_call.1} parent=1 // pred_check_branch
      %29 = sbr.rel (0) target = $region9
    $region8: #{tpu_custom_call.1} parent=1 // pred_region
      %s31 = ssub.s32 512, 512
      %32 = vsyncadd [#allocation6], %s31
      %s33 = sshll.u32 [#allocation5], 4
      %s34 = int_to_ptr.vmem [resolvable:$true] %s33
      %39 = dma.hbm_to_vmem [thread:$0]  %s1, 512, %s34, [#allocation6], 128, 128, 8
    $region9: #{tpu_custom_call.1} parent=1 // pred_fallthru
      _
    // Predicated region
    $region10: #{tpu_custom_call.1} parent=1 // pred_check
      _
    $region11: #{tpu_custom_call.1} parent=1 // pred_check_branch
      %41 = sbr.rel (0) target = $region13
    $region12: #{tpu_custom_call.1} parent=1 // pred_region
      _
    $region13: #{tpu_custom_call.1} parent=1 // pred_fallthru
      _
    // Predicated region
    $region14: #{tpu_custom_call.1} parent=1 // pred_check
      _
    $region15: #{tpu_custom_call.1} parent=1 // pred_check_branch
      %43 = sbr.rel (0) target = $region17
    $region16: #{tpu_custom_call.1} parent=1 // pred_region
      _
    $region17: #{tpu_custom_call.1} parent=1 // pred_fallthru
      _
    // Predicated region
    $region18: #{tpu_custom_call.1} parent=1 // pred_check
      _
    $region19: #{tpu_custom_call.1} parent=1 // pred_check_branch
      %45 = sbr.rel (0) target = $region21
    $region20: #{tpu_custom_call.1} parent=1 // pred_region
      %46 = dma.done [#allocation3], 256
    $region21: #{tpu_custom_call.1} parent=1 // pred_fallthru
      _
    // Predicated region
    $region22: #{tpu_custom_call.1} parent=1 // pred_check
      _
    $region23: #{tpu_custom_call.1} parent=1 // pred_check_branch
      %48 = sbr.rel (0) target = $region25
    $region24: #{tpu_custom_call.1} parent=1 // pred_region
      %49 = dma.done [#allocation6], 512
    $region25: #{tpu_custom_call.1} parent=1 // pred_fallthru
      _
    %p50 = scmp.eq.s32.totalorder 0, 0
    // Predicated region
    $region26: #{tpu_custom_call.1} parent=1 // pred_check
      %p51 = pneg %p50
    $region27: #{tpu_custom_call.1} parent=1 // pred_check_branch
      %53 = sbr.rel (%p51) target = $region29
    $region28: #{tpu_custom_call.1} parent=1 // pred_region
      %vm54 = vcmask 254976
      %55 = vst.msk [vmem:[#allocation8] sm:$0x3] %vm54, 0.0
      %56 = vst.msk [vmem:[#allocation10] sm:$0x3] %vm54, 0.0
    $region29: #{tpu_custom_call.1} parent=1 // pred_fallthru
      _
    %v57 = vld [vmem:[#allocation5] sm:$0xff]
    %v58 = vld [vmem:[#allocation5 + $0x8] sm:$0xff]
    %v59 = vld [vmem:[#allocation5 + $0x10] sm:$0xff]
    %v60 = vld [vmem:[#allocation5 + $0x18] sm:$0xff]
    %v61 = vld [vmem:[%s2] sm:$0x1]
    %v62 = vld [vmem:[%s3] sm:$0x1]
    %v63 = vld [vmem:[#allocation8] sm:$0x3]
    %v64 = vld [vmem:[#allocation10] sm:$0x3]
    %v65 = vld [vmem:[#allocation2] sm:$0x1]
    %v66 = vld [vmem:[#allocation2 + $0x8] sm:$0x1]
    %vm67 = vcmask 261120
    %v69 = vsel %vm67, %v63, 0
    %71 = vmatprep.subr.mxu0 0.0
    %72 = vmatpush1.msra.mxu0 %v57
    %73 = vmatprep.subr.mxu0 0.0
    %74 = vmatpush1.msra.mxu0 %v58
    %75 = vmatprep.subr.mxu0 0.0
    %76 = vmatpush1.msra.mxu0 %v59
    %77 = vmatprep.subr.mxu0 0.0
    %78 = vmatpush1.msra.mxu0 %v60
    %79 = vmatprep.subr.mxu0 0.0
    %80 = vmatpush1.msra.mxu0 0.0
    %81 = vmatprep.subr.mxu0 0.0
    %82 = vmatpush1.msra.mxu0 0.0
    %83 = vmatprep.subr.mxu0 0.0
    %84 = vmatpush1.msra.mxu0 0.0
    %85 = vmatprep.subr.mxu0 0.0
    %86 = vmatpush1.msra.mxu0 0.0
    %87 = vmatprep.subr.mxu0 0.0
    %88 = vmatpush1.msra.mxu0 0.0
    %89 = vmatprep.subr.mxu0 0.0
    %90 = vmatpush1.msra.mxu0 0.0
    %91 = vmatprep.subr.mxu0 0.0
    %92 = vmatpush1.msra.mxu0 0.0
    %93 = vmatprep.subr.mxu0 0.0
    %94 = vmatpush1.msra.mxu0 0.0
    %95 = vmatprep.subr.mxu0 0.0
    %96 = vmatpush1.msra.mxu0 0.0
    %97 = vmatprep.subr.mxu0 0.0
    %98 = vmatpush1.msra.mxu0 0.0
    %99 = vmatprep.subr.mxu0 0.0
    %100 = vmatpush1.msra.mxu0 0.0
    %101 = vmatprep.subr.mxu0 0.0
    %102 = vmatpush1.msra.mxu0 0.0
    %103 = vmatprep.subr.mxu0 0.0
    %104 = vmatpush1.msra.mxu0 0.0
    %105 = vmatprep.subr.mxu0 0.0
    %106 = vmatpush1.msra.mxu0 0.0
    %107 = vmatprep.subr.mxu0 0.0
    %108 = vmatpush1.msra.mxu0 0.0
    %109 = vmatprep.subr.mxu0 0.0
    %110 = vmatpush1.msra.mxu0 0.0
    %111 = vmatprep.subr.mxu0 0.0
    %112 = vmatpush1.msra.mxu0 0.0
    %113 = vmatprep.subr.mxu0 0.0
    %114 = vmatpush1.msra.mxu0 0.0
    %115 = vmatprep.subr.mxu0 0.0
    %116 = vmatpush1.msra.mxu0 0.0
    %117 = vmatprep.subr.mxu0 0.0
    %118 = vmatpush1.msra.mxu0 0.0
    %119 = vmatprep.subr.mxu0 0.0
    %120 = vmatpush1.msra.mxu0 0.0
    %121 = vmatprep.subr.mxu0 0.0
    %122 = vmatpush1.msra.mxu0 0.0
    %123 = vmatprep.subr.mxu0 0.0
    %124 = vmatpush1.msra.mxu0 0.0
    %125 = vmatprep.subr.mxu0 0.0
    %126 = vmatpush1.msra.mxu0 0.0
    %127 = vmatprep.subr.mxu0 0.0
    %128 = vmatpush1.msra.mxu0 0.0
    %129 = vmatprep.subr.mxu0 0.0
    %130 = vmatpush1.msra.mxu0 0.0
    %131 = vmatprep.subr.mxu0 0.0
    %132 = vmatpush1.msra.mxu0 0.0
    %133 = vmatprep.subr.mxu0 0.0
    %134 = vmatpush1.msra.mxu0 0.0
    %135 = vmatprep.mubr.f32.mxu0 0.0
    %136 = vmatmul.mubr.f32.gmra.mrb[0].mxu0 %v69
    %v137 = vpop.f32.mrb[0].mxu0
    %v138 = vadd.f32 0.0, %v137
    %v139 = vpop.f32.mrb[0].mxu0
    %140 = vdwg.mxu0
    %v142 = vrot.slane %v138, 1
    %v145 = vadd.f32 %v65, %v138
    %v146 = vadd.f32 %v66, %v142
    %v147 = vxor.u32 %v145, 2147483648
    %v148 = vxor.u32 %v146, 2147483648
    %v149 = vmul.f32 %v147, 1.442695
    %v150 = vpow.pop %v149
    %v151 = vmul.f32 %v148, 1.442695
    %v152 = vpow.pop %v151
    %v153 = vadd.f32 %v150, 1.0
    %v154 = vadd.f32 %v152, 1.0
    %v155 = vrcp.pop %v153
    %v156 = vmul.f32 1.0, %v155
    %v157 = vrcp.pop %v154
    %v158 = vmul.f32 1.0, %v157
    %v159 = vtanh.pop %v145
    %v160 = vtanh.pop %v146
    %v162 = vrot.slane %v64, 1
    %163 = vrot.lane.b32.xlu0 %v64, 32
    %v164 = vpop.permute.xlu0 %163
    %165 = vrot.lane.b32.xlu0 %v162, 32
    %v166 = vpop.permute.xlu0 %165
    %v169 = vmul.f32 %v156, %v164
    %v170 = vmul.f32 %v158, %v166
    %173 = vrot.lane.b32.xlu0 %v159, 64
    %v174 = vpop.permute.xlu0 %173
    %175 = vrot.lane.b32.xlu0 %v160, 64
    %v176 = vpop.permute.xlu0 %175
    %v179 = vmul.f32 %v156, %v174
    %v180 = vmul.f32 %v158, %v176
    %183 = vrot.lane.b32.xlu0 %v179, 32
    %v184 = vpop.permute.xlu0 %183
    %185 = vrot.lane.b32.xlu0 %v180, 32
    %v186 = vpop.permute.xlu0 %185
    %v189 = vadd.f32 %v169, %v184
    %v190 = vadd.f32 %v170, %v186
    %v191 = vtanh.pop %v189
    %v192 = vtanh.pop %v190
    %195 = vrot.lane.b32.xlu0 %v191, 64
    %v196 = vpop.permute.xlu0 %195
    %197 = vrot.lane.b32.xlu0 %v192, 64
    %v198 = vpop.permute.xlu0 %197
    %v201 = vmul.f32 %v156, %v196
    %v202 = vmul.f32 %v158, %v198
    %v205 = vrot.slane %v202, 7
    %vm206 = vcmask 1041409
    %v207 = vsel %vm206, %v205, %v201
    %208 = vrot.lane.b32.xlu0 %v207, 32
    %v209 = vpop.permute.xlu0 %208
    %vm211 = vcmask 254976
    %v212 = vsel %vm211, %v209, 0.0
    %213 = vadd.xlane.f32.xlu0 %v212
    %v214 = vpop.xlane.xlu0 %213
    %v215 = vrcp.pop 32.0
    %v216 = vmul.f32 %v214, %v215
    %v218 = vrot.slane %v216, 1
    %v221 = vsub.f32 %v201, %v216
    %v222 = vsub.f32 %v202, %v218
    %v223 = vmul.f32 %v221, %v221
    %v224 = vmul.f32 %v222, %v222
    %v227 = vrot.slane %v224, 7
    %v228 = vsel %vm206, %v227, %v223
    %229 = vrot.lane.b32.xlu0 %v228, 32
    %v230 = vpop.permute.xlu0 %229
    %v232 = vsel %vm211, %v230, 0.0
    %233 = vadd.xlane.f32.xlu0 %v232
    %v234 = vpop.xlane.xlu0 %233
    %v235 = vmul.f32 %v234, %v215
    %v236 = vadd.f32 %v235, 1e-05
    %v237 = vrsqrt.pop %v236
    %v239 = vrot.slane %v237, 1
    %v242 = vmul.f32 %v221, %v237
    %v243 = vmul.f32 %v222, %v239
    %v245 = vlaneseq
    %v246 = vshrl.u32 %v245, 7
    %v247 = vsub.s32 0, %v246
    %v248 = vrot.slane %v61, %v247
    %249 = vrot.lane.b32.xlu0 %v248, 96
    %v250 = vpop.permute.xlu0 %249
    %v252 = vmul.f32 %v242, %v250
    %v253 = vmul.f32 %v243, %v250
    %v255 = vlaneseq
    %v256 = vshrl.u32 %v255, 7
    %v257 = vsub.s32 0, %v256
    %v258 = vrot.slane %v62, %v257
    %259 = vrot.lane.b32.xlu0 %v258, 96
    %v260 = vpop.permute.xlu0 %259
    %v262 = vadd.f32 %v252, %v260
    %v263 = vadd.f32 %v253, %v260
    %v264 = vxor.u32 %v262, 2147483648
    %v265 = vxor.u32 %v263, 2147483648
    %v266 = vmul.f32 %v264, 1.442695
    %v267 = vpow.pop %v266
    %v268 = vmul.f32 %v265, 1.442695
    %v269 = vpow.pop %v268
    %v270 = vadd.f32 %v267, 1.0
    %v271 = vadd.f32 %v269, 1.0
    %v272 = vrcp.pop %v270
    %v273 = vmul.f32 1.0, %v272
    %v274 = vrcp.pop %v271
    %v275 = vmul.f32 1.0, %v274
    %v276 = vmul.f32 %v262, %v273
    %v277 = vmul.f32 %v263, %v275
    %280 = vrot.lane.b32.xlu0 %v276, 32
    %v281 = vpop.permute.xlu0 %280
    %282 = vrot.lane.b32.xlu0 %v277, 32
    %v283 = vpop.permute.xlu0 %282
    %vm286 = vcmask 253952
    %287 = vst.msk [vmem:[#allocation7] sm:$0x1] %vm286, %v281
    %288 = vst.msk [vmem:[#allocation7 + $0x8] sm:$0x1] %vm286, %v283
    %v289 = vld [vmem:[#allocation2 + $0x1] sm:$0x1]
    %v290 = vld [vmem:[#allocation2 + $0x9] sm:$0x1]
    %v291 = vsel %vm67, %v209, 0
    %293 = vmatprep.subr.mxu0 0.0
    %294 = vmatpush1.msra.mxu0 %v57
    %295 = vmatprep.subr.mxu0 0.0
    %296 = vmatpush1.msra.mxu0 %v58
    %297 = vmatprep.subr.mxu0 0.0
    %298 = vmatpush1.msra.mxu0 %v59
    %299 = vmatprep.subr.mxu0 0.0
    %300 = vmatpush1.msra.mxu0 %v60
    %301 = vmatprep.subr.mxu0 0.0
    %302 = vmatpush1.msra.mxu0 0.0
    %303 = vmatprep.subr.mxu0 0.0
    %304 = vmatpush1.msra.mxu0 0.0
    %305 = vmatprep.subr.mxu0 0.0
    %306 = vmatpush1.msra.mxu0 0.0
    %307 = vmatprep.subr.mxu0 0.0
    %308 = vmatpush1.msra.mxu0 0.0
    %309 = vmatprep.subr.mxu0 0.0
    %310 = vmatpush1.msra.mxu0 0.0
    %311 = vmatprep.subr.mxu0 0.0
    %312 = vmatpush1.msra.mxu0 0.0
    %313 = vmatprep.subr.mxu0 0.0
    %314 = vmatpush1.msra.mxu0 0.0
    %315 = vmatprep.subr.mxu0 0.0
    %316 = vmatpush1.msra.mxu0 0.0
    %317 = vmatprep.subr.mxu0 0.0
    %318 = vmatpush1.msra.mxu0 0.0
    %319 = vmatprep.subr.mxu0 0.0
    %320 = vmatpush1.msra.mxu0 0.0
    %321 = vmatprep.subr.mxu0 0.0
    %322 = vmatpush1.msra.mxu0 0.0
    %323 = vmatprep.subr.mxu0 0.0
    %324 = vmatpush1.msra.mxu0 0.0
    %325 = vmatprep.subr.mxu0 0.0
    %326 = vmatpush1.msra.mxu0 0.0
    %327 = vmatprep.subr.mxu0 0.0
    %328 = vmatpush1.msra.mxu0 0.0
    %329 = vmatprep.subr.mxu0 0.0
    %330 = vmatpush1.msra.mxu0 0.0
    %331 = vmatprep.subr.mxu0 0.0
    %332 = vmatpush1.msra.mxu0 0.0
    %333 = vmatprep.subr.mxu0 0.0
    %334 = vmatpush1.msra.mxu0 0.0
    %335 = vmatprep.subr.mxu0 0.0
    %336 = vmatpush1.msra.mxu0 0.0
    %337 = vmatprep.subr.mxu0 0.0
    %338 = vmatpush1.msra.mxu0 0.0
    %339 = vmatprep.subr.mxu0 0.0
    %340 = vmatpush1.msra.mxu0 0.0
    %341 = vmatprep.subr.mxu0 0.0
    %342 = vmatpush1.msra.mxu0 0.0
    %343 = vmatprep.subr.mxu0 0.0
    %344 = vmatpush1.msra.mxu0 0.0
    %345 = vmatprep.subr.mxu0 0.0
    %346 = vmatpush1.msra.mxu0 0.0
    %347 = vmatprep.subr.mxu0 0.0
    %348 = vmatpush1.msra.mxu0 0.0
    %349 = vmatprep.subr.mxu0 0.0
    %350 = vmatpush1.msra.mxu0 0.0
    %351 = vmatprep.subr.mxu0 0.0
    %352 = vmatpush1.msra.mxu0 0.0
    %353 = vmatprep.subr.mxu0 0.0
    %354 = vmatpush1.msra.mxu0 0.0
    %355 = vmatprep.subr.mxu0 0.0
    %356 = vmatpush1.msra.mxu0 0.0
    %357 = vmatprep.mubr.f32.mxu0 0.0
    %358 = vmatmul.mubr.f32.gmra.mrb[0].mxu0 %v291
    %v359 = vpop.f32.mrb[0].mxu0
    %v360 = vadd.f32 0.0, %v359
    %v361 = vpop.f32.mrb[0].mxu0
    %362 = vdwg.mxu0
    %v364 = vrot.slane %v360, 1
    %v367 = vadd.f32 %v289, %v360
    %v368 = vadd.f32 %v290, %v364
    %v369 = vxor.u32 %v367, 2147483648
    %v370 = vxor.u32 %v368, 2147483648
    %v371 = vmul.f32 %v369, 1.442695
    %v372 = vpow.pop %v371
    %v373 = vmul.f32 %v370, 1.442695
    %v374 = vpow.pop %v373
    %v375 = vadd.f32 %v372, 1.0
    %v376 = vadd.f32 %v374, 1.0
    %v377 = vrcp.pop %v375
    %v378 = vmul.f32 1.0, %v377
    %v379 = vrcp.pop %v376
    %v380 = vmul.f32 1.0, %v379
    %v381 = vtanh.pop %v367
    %v382 = vtanh.pop %v368
    %v383 = vmul.f32 %v378, %v189
    %v384 = vmul.f32 %v380, %v190
    %387 = vrot.lane.b32.xlu0 %v381, 64
    %v388 = vpop.permute.xlu0 %387
    %389 = vrot.lane.b32.xlu0 %v382, 64
    %v390 = vpop.permute.xlu0 %389
    %v393 = vmul.f32 %v378, %v388
    %v394 = vmul.f32 %v380, %v390
    %397 = vrot.lane.b32.xlu0 %v393, 32
    %v398 = vpop.permute.xlu0 %397
    %399 = vrot.lane.b32.xlu0 %v394, 32
    %v400 = vpop.permute.xlu0 %399
    %v403 = vadd.f32 %v383, %v398
    %v404 = vadd.f32 %v384, %v400
    %v405 = vtanh.pop %v403
    %v406 = vtanh.pop %v404
    %409 = vrot.lane.b32.xlu0 %v405, 64
    %v410 = vpop.permute.xlu0 %409
    %411 = vrot.lane.b32.xlu0 %v406, 64
    %v412 = vpop.permute.xlu0 %411
    %v415 = vmul.f32 %v378, %v410
    %v416 = vmul.f32 %v380, %v412
    %v419 = vrot.slane %v416, 7
    %v420 = vsel %vm206, %v419, %v415
    %421 = vrot.lane.b32.xlu0 %v420, 32
    %v422 = vpop.permute.xlu0 %421
    %v424 = vsel %vm211, %v422, 0.0
    %425 = vadd.xlane.f32.xlu0 %v424
    %v426 = vpop.xlane.xlu0 %425
    %v427 = vmul.f32 %v426, %v215
    %v429 = vrot.slane %v427, 1
    %v432 = vsub.f32 %v415, %v427
    %v433 = vsub.f32 %v416, %v429
    %v434 = vmul.f32 %v432, %v432
    %v435 = vmul.f32 %v433, %v433
    %v438 = vrot.slane %v435, 7
    %v439 = vsel %vm206, %v438, %v434
    %440 = vrot.lane.b32.xlu0 %v439, 32
    %v441 = vpop.permute.xlu0 %440
    %v443 = vsel %vm211, %v441, 0.0
    %444 = vadd.xlane.f32.xlu0 %v443
    %v445 = vpop.xlane.xlu0 %444
    %v446 = vmul.f32 %v445, %v215
    %v447 = vadd.f32 %v446, 1e-05
    %v448 = vrsqrt.pop %v447
    %v450 = vrot.slane %v448, 1
    %v453 = vmul.f32 %v432, %v448
    %v454 = vmul.f32 %v433, %v450
    %v455 = vmul.f32 %v453, %v250
    %v456 = vmul.f32 %v454, %v250
    %v457 = vadd.f32 %v455, %v260
    %v458 = vadd.f32 %v456, %v260
    %v459 = vxor.u32 %v457, 2147483648
    %v460 = vxor.u32 %v458, 2147483648
    %v461 = vmul.f32 %v459, 1.442695
    %v462 = vpow.pop %v461
    %v463 = vmul.f32 %v460, 1.442695
    %v464 = vpow.pop %v463
    %v465 = vadd.f32 %v462, 1.0
    %v466 = vadd.f32 %v464, 1.0
    %v467 = vrcp.pop %v465
    %v468 = vmul.f32 1.0, %v467
    %v469 = vrcp.pop %v466
    %v470 = vmul.f32 1.0, %v469
    %v471 = vmul.f32 %v457, %v468
    %v472 = vmul.f32 %v458, %v470
    %475 = vrot.lane.b32.xlu0 %v471, 32
    %v476 = vpop.permute.xlu0 %475
    %477 = vrot.lane.b32.xlu0 %v472, 32
    %v478 = vpop.permute.xlu0 %477
    %481 = vst.msk [vmem:[#allocation7 + $0x1] sm:$0x1] %vm286, %v476
    %482 = vst.msk [vmem:[#allocation7 + $0x9] sm:$0x1] %vm286, %v478
    %v483 = vld [vmem:[#allocation2 + $0x2] sm:$0x1]
    %v484 = vld [vmem:[#allocation2 + $0xa] sm:$0x1]
    %v485 = vsel %vm67, %v422, 0
    %487 = vmatprep.subr.mxu0 0.0
    %488 = vmatpush1.msra.mxu0 %v57
    %489 = vmatprep.subr.mxu0 0.0
    %490 = vmatpush1.msra.mxu0 %v58
    %491 = vmatprep.subr.mxu0 0.0
    %492 = vmatpush1.msra.mxu0 %v59
    %493 = vmatprep.subr.mxu0 0.0
    %494 = vmatpush1.msra.mxu0 %v60
    %495 = vmatprep.subr.mxu0 0.0
    %496 = vmatpush1.msra.mxu0 0.0
    %497 = vmatprep.subr.mxu0 0.0
    %498 = vmatpush1.msra.mxu0 0.0
    %499 = vmatprep.subr.mxu0 0.0
    %500 = vmatpush1.msra.mxu0 0.0
    %501 = vmatprep.subr.mxu0 0.0
    %502 = vmatpush1.msra.mxu0 0.0
    %503 = vmatprep.subr.mxu0 0.0
    %504 = vmatpush1.msra.mxu0 0.0
    %505 = vmatprep.subr.mxu0 0.0
    %506 = vmatpush1.msra.mxu0 0.0
    %507 = vmatprep.subr.mxu0 0.0
    %508 = vmatpush1.msra.mxu0 0.0
    %509 = vmatprep.subr.mxu0 0.0
    %510 = vmatpush1.msra.mxu0 0.0
    %511 = vmatprep.subr.mxu0 0.0
    %512 = vmatpush1.msra.mxu0 0.0
    %513 = vmatprep.subr.mxu0 0.0
    %514 = vmatpush1.msra.mxu0 0.0
    %515 = vmatprep.subr.mxu0 0.0
    %516 = vmatpush1.msra.mxu0 0.0
    %517 = vmatprep.subr.mxu0 0.0
    %518 = vmatpush1.msra.mxu0 0.0
    %519 = vmatprep.subr.mxu0 0.0
    %520 = vmatpush1.msra.mxu0 0.0
    %521 = vmatprep.subr.mxu0 0.0
    %522 = vmatpush1.msra.mxu0 0.0
    %523 = vmatprep.subr.mxu0 0.0
    %524 = vmatpush1.msra.mxu0 0.0
    %525 = vmatprep.subr.mxu0 0.0
    %526 = vmatpush1.msra.mxu0 0.0
    %527 = vmatprep.subr.mxu0 0.0
    %528 = vmatpush1.msra.mxu0 0.0
    %529 = vmatprep.subr.mxu0 0.0
    %530 = vmatpush1.msra.mxu0 0.0
    %531 = vmatprep.subr.mxu0 0.0
    %532 = vmatpush1.msra.mxu0 0.0
    %533 = vmatprep.subr.mxu0 0.0
    %534 = vmatpush1.msra.mxu0 0.0
    %535 = vmatprep.subr.mxu0 0.0
    %536 = vmatpush1.msra.mxu0 0.0
    %537 = vmatprep.subr.mxu0 0.0
    %538 = vmatpush1.msra.mxu0 0.0
    %539 = vmatprep.subr.mxu0 0.0
    %540 = vmatpush1.msra.mxu0 0.0
    %541 = vmatprep.subr.mxu0 0.0
    %542 = vmatpush1.msra.mxu0 0.0
    %543 = vmatprep.subr.mxu0 0.0
    %544 = vmatpush1.msra.mxu0 0.0
    %545 = vmatprep.subr.mxu0 0.0
    %546 = vmatpush1.msra.mxu0 0.0
    %547 = vmatprep.subr.mxu0 0.0
    %548 = vmatpush1.msra.mxu0 0.0
    %549 = vmatprep.subr.mxu0 0.0
    %550 = vmatpush1.msra.mxu0 0.0
    %551 = vmatprep.mubr.f32.mxu0 0.0
    %552 = vmatmul.mubr.f32.gmra.mrb[0].mxu0 %v485
    %v553 = vpop.f32.mrb[0].mxu0
    %v554 = vadd.f32 0.0, %v553
    %v555 = vpop.f32.mrb[0].mxu0
    %556 = vdwg.mxu0
    %v558 = vrot.slane %v554, 1
    %v561 = vadd.f32 %v483, %v554
    %v562 = vadd.f32 %v484, %v558
    %v563 = vxor.u32 %v561, 2147483648
    %v564 = vxor.u32 %v562, 2147483648
    %v565 = vmul.f32 %v563, 1.442695
    %v566 = vpow.pop %v565
    %v567 = vmul.f32 %v564, 1.442695
    %v568 = vpow.pop %v567
    %v569 = vadd.f32 %v566, 1.0
    %v570 = vadd.f32 %v568, 1.0
    %v571 = vrcp.pop %v569
    %v572 = vmul.f32 1.0, %v571
    %v573 = vrcp.pop %v570
    %v574 = vmul.f32 1.0, %v573
    %v575 = vtanh.pop %v561
    %v576 = vtanh.pop %v562
    %v577 = vmul.f32 %v572, %v403
    %v578 = vmul.f32 %v574, %v404
    %581 = vrot.lane.b32.xlu0 %v575, 64
    %v582 = vpop.permute.xlu0 %581
    %583 = vrot.lane.b32.xlu0 %v576, 64
    %v584 = vpop.permute.xlu0 %583
    %v587 = vmul.f32 %v572, %v582
    %v588 = vmul.f32 %v574, %v584
    %591 = vrot.lane.b32.xlu0 %v587, 32
    %v592 = vpop.permute.xlu0 %591
    %593 = vrot.lane.b32.xlu0 %v588, 32
    %v594 = vpop.permute.xlu0 %593
    %v597 = vadd.f32 %v577, %v592
    %v598 = vadd.f32 %v578, %v594
    %v599 = vtanh.pop %v597
    %v600 = vtanh.pop %v598
    %603 = vrot.lane.b32.xlu0 %v599, 64
    %v604 = vpop.permute.xlu0 %603
    %605 = vrot.lane.b32.xlu0 %v600, 64
    %v606 = vpop.permute.xlu0 %605
    %v609 = vmul.f32 %v572, %v604
    %v610 = vmul.f32 %v574, %v606
    %v613 = vrot.slane %v610, 7
    %v614 = vsel %vm206, %v613, %v609
    %615 = vrot.lane.b32.xlu0 %v614, 32
    %v616 = vpop.permute.xlu0 %615
    %v618 = vsel %vm211, %v616, 0.0
    %619 = vadd.xlane.f32.xlu0 %v618
    %v620 = vpop.xlane.xlu0 %619
    %v621 = vmul.f32 %v620, %v215
    %v623 = vrot.slane %v621, 1
    %v626 = vsub.f32 %v609, %v621
    %v627 = vsub.f32 %v610, %v623
    %v628 = vmul.f32 %v626, %v626
    %v629 = vmul.f32 %v627, %v627
    %v632 = vrot.slane %v629, 7
    %v633 = vsel %vm206, %v632, %v628
    %634 = vrot.lane.b32.xlu0 %v633, 32
    %v635 = vpop.permute.xlu0 %634
    %v637 = vsel %vm211, %v635, 0.0
    %638 = vadd.xlane.f32.xlu0 %v637
    %v639 = vpop.xlane.xlu0 %638
    %v640 = vmul.f32 %v639, %v215
    %v641 = vadd.f32 %v640, 1e-05
    %v642 = vrsqrt.pop %v641
    %v644 = vrot.slane %v642, 1
    %v647 = vmul.f32 %v626, %v642
    %v648 = vmul.f32 %v627, %v644
    %v649 = vmul.f32 %v647, %v250
    %v650 = vmul.f32 %v648, %v250
    %v651 = vadd.f32 %v649, %v260
    %v652 = vadd.f32 %v650, %v260
    %v653 = vxor.u32 %v651, 2147483648
    %v654 = vxor.u32 %v652, 2147483648
    %v655 = vmul.f32 %v653, 1.442695
    %v656 = vpow.pop %v655
    %v657 = vmul.f32 %v654, 1.442695
    %v658 = vpow.pop %v657
    %v659 = vadd.f32 %v656, 1.0
    %v660 = vadd.f32 %v658, 1.0
    %v661 = vrcp.pop %v659
    %v662 = vmul.f32 1.0, %v661
    %v663 = vrcp.pop %v660
    %v664 = vmul.f32 1.0, %v663
    %v665 = vmul.f32 %v651, %v662
    %v666 = vmul.f32 %v652, %v664
    %669 = vrot.lane.b32.xlu0 %v665, 32
    %v670 = vpop.permute.xlu0 %669
    %671 = vrot.lane.b32.xlu0 %v666, 32
    %v672 = vpop.permute.xlu0 %671
    %675 = vst.msk [vmem:[#allocation7 + $0x2] sm:$0x1] %vm286, %v670
    %676 = vst.msk [vmem:[#allocation7 + $0xa] sm:$0x1] %vm286, %v672
    %v677 = vld [vmem:[#allocation2 + $0x3] sm:$0x1]
    %v678 = vld [vmem:[#allocation2 + $0xb] sm:$0x1]
    %v679 = vsel %vm67, %v616, 0
    %681 = vmatprep.subr.mxu0 0.0
    %682 = vmatpush1.msra.mxu0 %v57
    %683 = vmatprep.subr.mxu0 0.0
    %684 = vmatpush1.msra.mxu0 %v58
    %685 = vmatprep.subr.mxu0 0.0
    %686 = vmatpush1.msra.mxu0 %v59
    %687 = vmatprep.subr.mxu0 0.0
    %688 = vmatpush1.msra.mxu0 %v60
    %689 = vmatprep.subr.mxu0 0.0
    %690 = vmatpush1.msra.mxu0 0.0
    %691 = vmatprep.subr.mxu0 0.0
    %692 = vmatpush1.msra.mxu0 0.0
    %693 = vmatprep.subr.mxu0 0.0
    %694 = vmatpush1.msra.mxu0 0.0
    %695 = vmatprep.subr.mxu0 0.0
    %696 = vmatpush1.msra.mxu0 0.0
    %697 = vmatprep.subr.mxu0 0.0
    %698 = vmatpush1.msra.mxu0 0.0
    %699 = vmatprep.subr.mxu0 0.0
    %700 = vmatpush1.msra.mxu0 0.0
    %701 = vmatprep.subr.mxu0 0.0
    %702 = vmatpush1.msra.mxu0 0.0
    %703 = vmatprep.subr.mxu0 0.0
    %704 = vmatpush1.msra.mxu0 0.0
    %705 = vmatprep.subr.mxu0 0.0
    %706 = vmatpush1.msra.mxu0 0.0
    %707 = vmatprep.subr.mxu0 0.0
    %708 = vmatpush1.msra.mxu0 0.0
    %709 = vmatprep.subr.mxu0 0.0
    %710 = vmatpush1.msra.mxu0 0.0
    %711 = vmatprep.subr.mxu0 0.0
    %712 = vmatpush1.msra.mxu0 0.0
    %713 = vmatprep.subr.mxu0 0.0
    %714 = vmatpush1.msra.mxu0 0.0
    %715 = vmatprep.subr.mxu0 0.0
    %716 = vmatpush1.msra.mxu0 0.0
    %717 = vmatprep.subr.mxu0 0.0
    %718 = vmatpush1.msra.mxu0 0.0
    %719 = vmatprep.subr.mxu0 0.0
    %720 = vmatpush1.msra.mxu0 0.0
    %721 = vmatprep.subr.mxu0 0.0
    %722 = vmatpush1.msra.mxu0 0.0
    %723 = vmatprep.subr.mxu0 0.0
    %724 = vmatpush1.msra.mxu0 0.0
    %725 = vmatprep.subr.mxu0 0.0
    %726 = vmatpush1.msra.mxu0 0.0
    %727 = vmatprep.subr.mxu0 0.0
    %728 = vmatpush1.msra.mxu0 0.0
    %729 = vmatprep.subr.mxu0 0.0
    %730 = vmatpush1.msra.mxu0 0.0
    %731 = vmatprep.subr.mxu0 0.0
    %732 = vmatpush1.msra.mxu0 0.0
    %733 = vmatprep.subr.mxu0 0.0
    %734 = vmatpush1.msra.mxu0 0.0
    %735 = vmatprep.subr.mxu0 0.0
    %736 = vmatpush1.msra.mxu0 0.0
    %737 = vmatprep.subr.mxu0 0.0
    %738 = vmatpush1.msra.mxu0 0.0
    %739 = vmatprep.subr.mxu0 0.0
    %740 = vmatpush1.msra.mxu0 0.0
    %741 = vmatprep.subr.mxu0 0.0
    %742 = vmatpush1.msra.mxu0 0.0
    %743 = vmatprep.subr.mxu0 0.0
    %744 = vmatpush1.msra.mxu0 0.0
    %745 = vmatprep.mubr.f32.mxu0 0.0
    %746 = vmatmul.mubr.f32.gmra.mrb[0].mxu0 %v679
    %v747 = vpop.f32.mrb[0].mxu0
    %v748 = vadd.f32 0.0, %v747
    %v749 = vpop.f32.mrb[0].mxu0
    %750 = vdwg.mxu0
    %v752 = vrot.slane %v748, 1
    %v755 = vadd.f32 %v677, %v748
    %v756 = vadd.f32 %v678, %v752
    %v757 = vxor.u32 %v755, 2147483648
    %v758 = vxor.u32 %v756, 2147483648
    %v759 = vmul.f32 %v757, 1.442695
    %v760 = vpow.pop %v759
    %v761 = vmul.f32 %v758, 1.442695
    %v762 = vpow.pop %v761
    %v763 = vadd.f32 %v760, 1.0
    %v764 = vadd.f32 %v762, 1.0
    %v765 = vrcp.pop %v763
    %v766 = vmul.f32 1.0, %v765
    %v767 = vrcp.pop %v764
    %v768 = vmul.f32 1.0, %v767
    %v769 = vtanh.pop %v755
    %v770 = vtanh.pop %v756
    %v771 = vmul.f32 %v766, %v597
    %v772 = vmul.f32 %v768, %v598
    %775 = vrot.lane.b32.xlu0 %v769, 64
    %v776 = vpop.permute.xlu0 %775
    %777 = vrot.lane.b32.xlu0 %v770, 64
    %v778 = vpop.permute.xlu0 %777
    %v781 = vmul.f32 %v766, %v776
    %v782 = vmul.f32 %v768, %v778
    %785 = vrot.lane.b32.xlu0 %v781, 32
    %v786 = vpop.permute.xlu0 %785
    %787 = vrot.lane.b32.xlu0 %v782, 32
    %v788 = vpop.permute.xlu0 %787
    %v791 = vadd.f32 %v771, %v786
    %v792 = vadd.f32 %v772, %v788
    %v793 = vtanh.pop %v791
    %v794 = vtanh.pop %v792
    %797 = vrot.lane.b32.xlu0 %v793, 64
    %v798 = vpop.permute.xlu0 %797
    %799 = vrot.lane.b32.xlu0 %v794, 64
    %v800 = vpop.permute.xlu0 %799
    %v803 = vmul.f32 %v766, %v798
    %v804 = vmul.f32 %v768, %v800
    %v807 = vrot.slane %v804, 7
    %v808 = vsel %vm206, %v807, %v803
    %809 = vrot.lane.b32.xlu0 %v808, 32
    %v810 = vpop.permute.xlu0 %809
    %v812 = vsel %vm211, %v810, 0.0
    %813 = vadd.xlane.f32.xlu0 %v812
    %v814 = vpop.xlane.xlu0 %813
    %v815 = vmul.f32 %v814, %v215
    %v817 = vrot.slane %v815, 1
    %v820 = vsub.f32 %v803, %v815
    %v821 = vsub.f32 %v804, %v817
    %v822 = vmul.f32 %v820, %v820
    %v823 = vmul.f32 %v821, %v821
    %v826 = vrot.slane %v823, 7
    %v827 = vsel %vm206, %v826, %v822
    %828 = vrot.lane.b32.xlu0 %v827, 32
    %v829 = vpop.permute.xlu0 %828
    %v831 = vsel %vm211, %v829, 0.0
    %832 = vadd.xlane.f32.xlu0 %v831
    %v833 = vpop.xlane.xlu0 %832
    %v834 = vmul.f32 %v833, %v215
    %v835 = vadd.f32 %v834, 1e-05
    %v836 = vrsqrt.pop %v835
    %v838 = vrot.slane %v836, 1
    %v841 = vmul.f32 %v820, %v836
    %v842 = vmul.f32 %v821, %v838
    %v843 = vmul.f32 %v841, %v250
    %v844 = vmul.f32 %v842, %v250
    %v845 = vadd.f32 %v843, %v260
    %v846 = vadd.f32 %v844, %v260
    %v847 = vxor.u32 %v845, 2147483648
    %v848 = vxor.u32 %v846, 2147483648
    %v849 = vmul.f32 %v847, 1.442695
    %v850 = vpow.pop %v849
    %v851 = vmul.f32 %v848, 1.442695
    %v852 = vpow.pop %v851
    %v853 = vadd.f32 %v850, 1.0
    %v854 = vadd.f32 %v852, 1.0
    %v855 = vrcp.pop %v853
    %v856 = vmul.f32 1.0, %v855
    %v857 = vrcp.pop %v854
    %v858 = vmul.f32 1.0, %v857
    %v859 = vmul.f32 %v845, %v856
    %v860 = vmul.f32 %v846, %v858
    %863 = vrot.lane.b32.xlu0 %v859, 32
    %v864 = vpop.permute.xlu0 %863
    %865 = vrot.lane.b32.xlu0 %v860, 32
    %v866 = vpop.permute.xlu0 %865
    %869 = vst.msk [vmem:[#allocation7 + $0x3] sm:$0x1] %vm286, %v864
    %870 = vst.msk [vmem:[#allocation7 + $0xb] sm:$0x1] %vm286, %v866
    %v871 = vld [vmem:[#allocation2 + $0x4] sm:$0x1]
    %v872 = vld [vmem:[#allocation2 + $0xc] sm:$0x1]
    %v873 = vsel %vm67, %v810, 0
    %875 = vmatprep.subr.mxu0 0.0
    %876 = vmatpush1.msra.mxu0 %v57
    %877 = vmatprep.subr.mxu0 0.0
    %878 = vmatpush1.msra.mxu0 %v58
    %879 = vmatprep.subr.mxu0 0.0
    %880 = vmatpush1.msra.mxu0 %v59
    %881 = vmatprep.subr.mxu0 0.0
    %882 = vmatpush1.msra.mxu0 %v60
    %883 = vmatprep.subr.mxu0 0.0
    %884 = vmatpush1.msra.mxu0 0.0
    %885 = vmatprep.subr.mxu0 0.0
    %886 = vmatpush1.msra.mxu0 0.0
    %887 = vmatprep.subr.mxu0 0.0
    %888 = vmatpush1.msra.mxu0 0.0
    %889 = vmatprep.subr.mxu0 0.0
    %890 = vmatpush1.msra.mxu0 0.0
    %891 = vmatprep.subr.mxu0 0.0
    %892 = vmatpush1.msra.mxu0 0.0
    %893 = vmatprep.subr.mxu0 0.0
    %894 = vmatpush1.msra.mxu0 0.0
    %895 = vmatprep.subr.mxu0 0.0
    %896 = vmatpush1.msra.mxu0 0.0
    %897 = vmatprep.subr.mxu0 0.0
    %898 = vmatpush1.msra.mxu0 0.0
    %899 = vmatprep.subr.mxu0 0.0
    %900 = vmatpush1.msra.mxu0 0.0
    %901 = vmatprep.subr.mxu0 0.0
    %902 = vmatpush1.msra.mxu0 0.0
    %903 = vmatprep.subr.mxu0 0.0
    %904 = vmatpush1.msra.mxu0 0.0
    %905 = vmatprep.subr.mxu0 0.0
    %906 = vmatpush1.msra.mxu0 0.0
    %907 = vmatprep.subr.mxu0 0.0
    %908 = vmatpush1.msra.mxu0 0.0
    %909 = vmatprep.subr.mxu0 0.0
    %910 = vmatpush1.msra.mxu0 0.0
    %911 = vmatprep.subr.mxu0 0.0
    %912 = vmatpush1.msra.mxu0 0.0
    %913 = vmatprep.subr.mxu0 0.0
    %914 = vmatpush1.msra.mxu0 0.0
    %915 = vmatprep.subr.mxu0 0.0
    %916 = vmatpush1.msra.mxu0 0.0
    %917 = vmatprep.subr.mxu0 0.0
    %918 = vmatpush1.msra.mxu0 0.0
    %919 = vmatprep.subr.mxu0 0.0
    %920 = vmatpush1.msra.mxu0 0.0
    %921 = vmatprep.subr.mxu0 0.0
    %922 = vmatpush1.msra.mxu0 0.0
    %923 = vmatprep.subr.mxu0 0.0
    %924 = vmatpush1.msra.mxu0 0.0
    %925 = vmatprep.subr.mxu0 0.0
    %926 = vmatpush1.msra.mxu0 0.0
    %927 = vmatprep.subr.mxu0 0.0
    %928 = vmatpush1.msra.mxu0 0.0
    %929 = vmatprep.subr.mxu0 0.0
    %930 = vmatpush1.msra.mxu0 0.0
    %931 = vmatprep.subr.mxu0 0.0
    %932 = vmatpush1.msra.mxu0 0.0
    %933 = vmatprep.subr.mxu0 0.0
    %934 = vmatpush1.msra.mxu0 0.0
    %935 = vmatprep.subr.mxu0 0.0
    %936 = vmatpush1.msra.mxu0 0.0
    %937 = vmatprep.subr.mxu0 0.0
    %938 = vmatpush1.msra.mxu0 0.0
    %939 = vmatprep.mubr.f32.mxu0 0.0
    %940 = vmatmul.mubr.f32.gmra.mrb[0].mxu0 %v873
    %v941 = vpop.f32.mrb[0].mxu0
    %v942 = vadd.f32 0.0, %v941
    %v943 = vpop.f32.mrb[0].mxu0
    %944 = vdwg.mxu0
    %v946 = vrot.slane %v942, 1
    %v949 = vadd.f32 %v871, %v942
    %v950 = vadd.f32 %v872, %v946
    %v951 = vxor.u32 %v949, 2147483648
    %v952 = vxor.u32 %v950, 2147483648
    %v953 = vmul.f32 %v951, 1.442695
    %v954 = vpow.pop %v953
    %v955 = vmul.f32 %v952, 1.442695
    %v956 = vpow.pop %v955
    %v957 = vadd.f32 %v954, 1.0
    %v958 = vadd.f32 %v956, 1.0
    %v959 = vrcp.pop %v957
    %v960 = vmul.f32 1.0, %v959
    %v961 = vrcp.pop %v958
    %v962 = vmul.f32 1.0, %v961
    %v963 = vtanh.pop %v949
    %v964 = vtanh.pop %v950
    %v965 = vmul.f32 %v960, %v791
    %v966 = vmul.f32 %v962, %v792
    %969 = vrot.lane.b32.xlu0 %v963, 64
    %v970 = vpop.permute.xlu0 %969
    %971 = vrot.lane.b32.xlu0 %v964, 64
    %v972 = vpop.permute.xlu0 %971
    %v975 = vmul.f32 %v960, %v970
    %v976 = vmul.f32 %v962, %v972
    %979 = vrot.lane.b32.xlu0 %v975, 32
    %v980 = vpop.permute.xlu0 %979
    %981 = vrot.lane.b32.xlu0 %v976, 32
    %v982 = vpop.permute.xlu0 %981
    %v985 = vadd.f32 %v965, %v980
    %v986 = vadd.f32 %v966, %v982
    %v987 = vtanh.pop %v985
    %v988 = vtanh.pop %v986
    %991 = vrot.lane.b32.xlu0 %v987, 64
    %v992 = vpop.permute.xlu0 %991
    %993 = vrot.lane.b32.xlu0 %v988, 64
    %v994 = vpop.permute.xlu0 %993
    %v997 = vmul.f32 %v960, %v992
    %v998 = vmul.f32 %v962, %v994
    %v1001 = vrot.slane %v998, 7
    %v1002 = vsel %vm206, %v1001, %v997
    %1003 = vrot.lane.b32.xlu0 %v1002, 32
    %v1004 = vpop.permute.xlu0 %1003
    %v1006 = vsel %vm211, %v1004, 0.0
    %1007 = vadd.xlane.f32.xlu0 %v1006
    %v1008 = vpop.xlane.xlu0 %1007
    %v1009 = vmul.f32 %v1008, %v215
    %v1011 = vrot.slane %v1009, 1
    %v1014 = vsub.f32 %v997, %v1009
    %v1015 = vsub.f32 %v998, %v1011
    %v1016 = vmul.f32 %v1014, %v1014
    %v1017 = vmul.f32 %v1015, %v1015
    %v1020 = vrot.slane %v1017, 7
    %v1021 = vsel %vm206, %v1020, %v1016
    %1022 = vrot.lane.b32.xlu0 %v1021, 32
    %v1023 = vpop.permute.xlu0 %1022
    %v1025 = vsel %vm211, %v1023, 0.0
    %1026 = vadd.xlane.f32.xlu0 %v1025
    %v1027 = vpop.xlane.xlu0 %1026
    %v1028 = vmul.f32 %v1027, %v215
    %v1029 = vadd.f32 %v1028, 1e-05
    %v1030 = vrsqrt.pop %v1029
    %v1032 = vrot.slane %v1030, 1
    %v1035 = vmul.f32 %v1014, %v1030
    %v1036 = vmul.f32 %v1015, %v1032
    %v1037 = vmul.f32 %v1035, %v250
    %v1038 = vmul.f32 %v1036, %v250
    %v1039 = vadd.f32 %v1037, %v260
    %v1040 = vadd.f32 %v1038, %v260
    %v1041 = vxor.u32 %v1039, 2147483648
    %v1042 = vxor.u32 %v1040, 2147483648
    %v1043 = vmul.f32 %v1041, 1.442695
    %v1044 = vpow.pop %v1043
    %v1045 = vmul.f32 %v1042, 1.442695
    %v1046 = vpow.pop %v1045
    %v1047 = vadd.f32 %v1044, 1.0
    %v1048 = vadd.f32 %v1046, 1.0
    %v1049 = vrcp.pop %v1047
    %v1050 = vmul.f32 1.0, %v1049
    %v1051 = vrcp.pop %v1048
    %v1052 = vmul.f32 1.0, %v1051
    %v1053 = vmul.f32 %v1039, %v1050
    %v1054 = vmul.f32 %v1040, %v1052
    %1057 = vrot.lane.b32.xlu0 %v1053, 32
    %v1058 = vpop.permute.xlu0 %1057
    %1059 = vrot.lane.b32.xlu0 %v1054, 32
    %v1060 = vpop.permute.xlu0 %1059
    %1063 = vst.msk [vmem:[#allocation7 + $0x4] sm:$0x1] %vm286, %v1058
    %1064 = vst.msk [vmem:[#allocation7 + $0xc] sm:$0x1] %vm286, %v1060
    %v1065 = vld [vmem:[#allocation2 + $0x5] sm:$0x1]
    %v1066 = vld [vmem:[#allocation2 + $0xd] sm:$0x1]
    %v1067 = vsel %vm67, %v1004, 0
    %1069 = vmatprep.subr.mxu0 0.0
    %1070 = vmatpush1.msra.mxu0 %v57
    %1071 = vmatprep.subr.mxu0 0.0
    %1072 = vmatpush1.msra.mxu0 %v58
    %1073 = vmatprep.subr.mxu0 0.0
    %1074 = vmatpush1.msra.mxu0 %v59
    %1075 = vmatprep.subr.mxu0 0.0
    %1076 = vmatpush1.msra.mxu0 %v60
    %1077 = vmatprep.subr.mxu0 0.0
    %1078 = vmatpush1.msra.mxu0 0.0
    %1079 = vmatprep.subr.mxu0 0.0
    %1080 = vmatpush1.msra.mxu0 0.0
    %1081 = vmatprep.subr.mxu0 0.0
    %1082 = vmatpush1.msra.mxu0 0.0
    %1083 = vmatprep.subr.mxu0 0.0
    %1084 = vmatpush1.msra.mxu0 0.0
    %1085 = vmatprep.subr.mxu0 0.0
    %1086 = vmatpush1.msra.mxu0 0.0
    %1087 = vmatprep.subr.mxu0 0.0
    %1088 = vmatpush1.msra.mxu0 0.0
    %1089 = vmatprep.subr.mxu0 0.0
    %1090 = vmatpush1.msra.mxu0 0.0
    %1091 = vmatprep.subr.mxu0 0.0
    %1092 = vmatpush1.msra.mxu0 0.0
    %1093 = vmatprep.subr.mxu0 0.0
    %1094 = vmatpush1.msra.mxu0 0.0
    %1095 = vmatprep.subr.mxu0 0.0
    %1096 = vmatpush1.msra.mxu0 0.0
    %1097 = vmatprep.subr.mxu0 0.0
    %1098 = vmatpush1.msra.mxu0 0.0
    %1099 = vmatprep.subr.mxu0 0.0
    %1100 = vmatpush1.msra.mxu0 0.0
    %1101 = vmatprep.subr.mxu0 0.0
    %1102 = vmatpush1.msra.mxu0 0.0
    %1103 = vmatprep.subr.mxu0 0.0
    %1104 = vmatpush1.msra.mxu0 0.0
    %1105 = vmatprep.subr.mxu0 0.0
    %1106 = vmatpush1.msra.mxu0 0.0
    %1107 = vmatprep.subr.mxu0 0.0
    %1108 = vmatpush1.msra.mxu0 0.0
    %1109 = vmatprep.subr.mxu0 0.0
    %1110 = vmatpush1.msra.mxu0 0.0
    %1111 = vmatprep.subr.mxu0 0.0
    %1112 = vmatpush1.msra.mxu0 0.0
    %1113 = vmatprep.subr.mxu0 0.0
    %1114 = vmatpush1.msra.mxu0 0.0
    %1115 = vmatprep.subr.mxu0 0.0
    %1116 = vmatpush1.msra.mxu0 0.0
    %1117 = vmatprep.subr.mxu0 0.0
    %1118 = vmatpush1.msra.mxu0 0.0
    %1119 = vmatprep.subr.mxu0 0.0
    %1120 = vmatpush1.msra.mxu0 0.0
    %1121 = vmatprep.subr.mxu0 0.0
    %1122 = vmatpush1.msra.mxu0 0.0
    %1123 = vmatprep.subr.mxu0 0.0
    %1124 = vmatpush1.msra.mxu0 0.0
    %1125 = vmatprep.subr.mxu0 0.0
    %1126 = vmatpush1.msra.mxu0 0.0
    %1127 = vmatprep.subr.mxu0 0.0
    %1128 = vmatpush1.msra.mxu0 0.0
    %1129 = vmatprep.subr.mxu0 0.0
    %1130 = vmatpush1.msra.mxu0 0.0
    %1131 = vmatprep.subr.mxu0 0.0
    %1132 = vmatpush1.msra.mxu0 0.0
    %1133 = vmatprep.mubr.f32.mxu0 0.0
    %1134 = vmatmul.mubr.f32.gmra.mrb[0].mxu0 %v1067
    %v1135 = vpop.f32.mrb[0].mxu0
    %v1136 = vadd.f32 0.0, %v1135
    %v1137 = vpop.f32.mrb[0].mxu0
    %1138 = vdwg.mxu0
    %v1140 = vrot.slane %v1136, 1
    %v1143 = vadd.f32 %v1065, %v1136
    %v1144 = vadd.f32 %v1066, %v1140
    %v1145 = vxor.u32 %v1143, 2147483648
    %v1146 = vxor.u32 %v1144, 2147483648
    %v1147 = vmul.f32 %v1145, 1.442695
    %v1148 = vpow.pop %v1147
    %v1149 = vmul.f32 %v1146, 1.442695
    %v1150 = vpow.pop %v1149
    %v1151 = vadd.f32 %v1148, 1.0
    %v1152 = vadd.f32 %v1150, 1.0
    %v1153 = vrcp.pop %v1151
    %v1154 = vmul.f32 1.0, %v1153
    %v1155 = vrcp.pop %v1152
    %v1156 = vmul.f32 1.0, %v1155
    %v1157 = vtanh.pop %v1143
    %v1158 = vtanh.pop %v1144
    %v1159 = vmul.f32 %v1154, %v985
    %v1160 = vmul.f32 %v1156, %v986
    %1163 = vrot.lane.b32.xlu0 %v1157, 64
    %v1164 = vpop.permute.xlu0 %1163
    %1165 = vrot.lane.b32.xlu0 %v1158, 64
    %v1166 = vpop.permute.xlu0 %1165
    %v1169 = vmul.f32 %v1154, %v1164
    %v1170 = vmul.f32 %v1156, %v1166
    %1173 = vrot.lane.b32.xlu0 %v1169, 32
    %v1174 = vpop.permute.xlu0 %1173
    %1175 = vrot.lane.b32.xlu0 %v1170, 32
    %v1176 = vpop.permute.xlu0 %1175
    %v1179 = vadd.f32 %v1159, %v1174
    %v1180 = vadd.f32 %v1160, %v1176
    %v1181 = vtanh.pop %v1179
    %v1182 = vtanh.pop %v1180
    %1185 = vrot.lane.b32.xlu0 %v1181, 64
    %v1186 = vpop.permute.xlu0 %1185
    %1187 = vrot.lane.b32.xlu0 %v1182, 64
    %v1188 = vpop.permute.xlu0 %1187
    %v1191 = vmul.f32 %v1154, %v1186
    %v1192 = vmul.f32 %v1156, %v1188
    %v1195 = vrot.slane %v1192, 7
    %v1196 = vsel %vm206, %v1195, %v1191
    %1197 = vrot.lane.b32.xlu0 %v1196, 32
    %v1198 = vpop.permute.xlu0 %1197
    %v1200 = vsel %vm211, %v1198, 0.0
    %1201 = vadd.xlane.f32.xlu0 %v1200
    %v1202 = vpop.xlane.xlu0 %1201
    %v1203 = vmul.f32 %v1202, %v215
    %v1205 = vrot.slane %v1203, 1
    %v1208 = vsub.f32 %v1191, %v1203
    %v1209 = vsub.f32 %v1192, %v1205
    %v1210 = vmul.f32 %v1208, %v1208
    %v1211 = vmul.f32 %v1209, %v1209
    %v1214 = vrot.slane %v1211, 7
    %v1215 = vsel %vm206, %v1214, %v1210
    %1216 = vrot.lane.b32.xlu0 %v1215, 32
    %v1217 = vpop.permute.xlu0 %1216
    %v1219 = vsel %vm211, %v1217, 0.0
    %1220 = vadd.xlane.f32.xlu0 %v1219
    %v1221 = vpop.xlane.xlu0 %1220
    %v1222 = vmul.f32 %v1221, %v215
    %v1223 = vadd.f32 %v1222, 1e-05
    %v1224 = vrsqrt.pop %v1223
    %v1226 = vrot.slane %v1224, 1
    %v1229 = vmul.f32 %v1208, %v1224
    %v1230 = vmul.f32 %v1209, %v1226
    %v1231 = vmul.f32 %v1229, %v250
    %v1232 = vmul.f32 %v1230, %v250
    %v1233 = vadd.f32 %v1231, %v260
    %v1234 = vadd.f32 %v1232, %v260
    %v1235 = vxor.u32 %v1233, 2147483648
    %v1236 = vxor.u32 %v1234, 2147483648
    %v1237 = vmul.f32 %v1235, 1.442695
    %v1238 = vpow.pop %v1237
    %v1239 = vmul.f32 %v1236, 1.442695
    %v1240 = vpow.pop %v1239
    %v1241 = vadd.f32 %v1238, 1.0
    %v1242 = vadd.f32 %v1240, 1.0
    %v1243 = vrcp.pop %v1241
    %v1244 = vmul.f32 1.0, %v1243
    %v1245 = vrcp.pop %v1242
    %v1246 = vmul.f32 1.0, %v1245
    %v1247 = vmul.f32 %v1233, %v1244
    %v1248 = vmul.f32 %v1234, %v1246
    %1251 = vrot.lane.b32.xlu0 %v1247, 32
    %v1252 = vpop.permute.xlu0 %1251
    %1253 = vrot.lane.b32.xlu0 %v1248, 32
    %v1254 = vpop.permute.xlu0 %1253
    %1257 = vst.msk [vmem:[#allocation7 + $0x5] sm:$0x1] %vm286, %v1252
    %1258 = vst.msk [vmem:[#allocation7 + $0xd] sm:$0x1] %vm286, %v1254
    %v1259 = vld [vmem:[#allocation2 + $0x6] sm:$0x1]
    %v1260 = vld [vmem:[#allocation2 + $0xe] sm:$0x1]
    %v1261 = vsel %vm67, %v1198, 0
    %1263 = vmatprep.subr.mxu0 0.0
    %1264 = vmatpush1.msra.mxu0 %v57
    %1265 = vmatprep.subr.mxu0 0.0
    %1266 = vmatpush1.msra.mxu0 %v58
    %1267 = vmatprep.subr.mxu0 0.0
    %1268 = vmatpush1.msra.mxu0 %v59
    %1269 = vmatprep.subr.mxu0 0.0
    %1270 = vmatpush1.msra.mxu0 %v60
    %1271 = vmatprep.subr.mxu0 0.0
    %1272 = vmatpush1.msra.mxu0 0.0
    %1273 = vmatprep.subr.mxu0 0.0
    %1274 = vmatpush1.msra.mxu0 0.0
    %1275 = vmatprep.subr.mxu0 0.0
    %1276 = vmatpush1.msra.mxu0 0.0
    %1277 = vmatprep.subr.mxu0 0.0
    %1278 = vmatpush1.msra.mxu0 0.0
    %1279 = vmatprep.subr.mxu0 0.0
    %1280 = vmatpush1.msra.mxu0 0.0
    %1281 = vmatprep.subr.mxu0 0.0
    %1282 = vmatpush1.msra.mxu0 0.0
    %1283 = vmatprep.subr.mxu0 0.0
    %1284 = vmatpush1.msra.mxu0 0.0
    %1285 = vmatprep.subr.mxu0 0.0
    %1286 = vmatpush1.msra.mxu0 0.0
    %1287 = vmatprep.subr.mxu0 0.0
    %1288 = vmatpush1.msra.mxu0 0.0
    %1289 = vmatprep.subr.mxu0 0.0
    %1290 = vmatpush1.msra.mxu0 0.0
    %1291 = vmatprep.subr.mxu0 0.0
    %1292 = vmatpush1.msra.mxu0 0.0
    %1293 = vmatprep.subr.mxu0 0.0
    %1294 = vmatpush1.msra.mxu0 0.0
    %1295 = vmatprep.subr.mxu0 0.0
    %1296 = vmatpush1.msra.mxu0 0.0
    %1297 = vmatprep.subr.mxu0 0.0
    %1298 = vmatpush1.msra.mxu0 0.0
    %1299 = vmatprep.subr.mxu0 0.0
    %1300 = vmatpush1.msra.mxu0 0.0
    %1301 = vmatprep.subr.mxu0 0.0
    %1302 = vmatpush1.msra.mxu0 0.0
    %1303 = vmatprep.subr.mxu0 0.0
    %1304 = vmatpush1.msra.mxu0 0.0
    %1305 = vmatprep.subr.mxu0 0.0
    %1306 = vmatpush1.msra.mxu0 0.0
    %1307 = vmatprep.subr.mxu0 0.0
    %1308 = vmatpush1.msra.mxu0 0.0
    %1309 = vmatprep.subr.mxu0 0.0
    %1310 = vmatpush1.msra.mxu0 0.0
    %1311 = vmatprep.subr.mxu0 0.0
    %1312 = vmatpush1.msra.mxu0 0.0
    %1313 = vmatprep.subr.mxu0 0.0
    %1314 = vmatpush1.msra.mxu0 0.0
    %1315 = vmatprep.subr.mxu0 0.0
    %1316 = vmatpush1.msra.mxu0 0.0
    %1317 = vmatprep.subr.mxu0 0.0
    %1318 = vmatpush1.msra.mxu0 0.0
    %1319 = vmatprep.subr.mxu0 0.0
    %1320 = vmatpush1.msra.mxu0 0.0
    %1321 = vmatprep.subr.mxu0 0.0
    %1322 = vmatpush1.msra.mxu0 0.0
    %1323 = vmatprep.subr.mxu0 0.0
    %1324 = vmatpush1.msra.mxu0 0.0
    %1325 = vmatprep.subr.mxu0 0.0
    %1326 = vmatpush1.msra.mxu0 0.0
    %1327 = vmatprep.mubr.f32.mxu0 0.0
    %1328 = vmatmul.mubr.f32.gmra.mrb[0].mxu0 %v1261
    %v1329 = vpop.f32.mrb[0].mxu0
    %v1330 = vadd.f32 0.0, %v1329
    %v1331 = vpop.f32.mrb[0].mxu0
    %1332 = vdwg.mxu0
    %v1334 = vrot.slane %v1330, 1
    %v1337 = vadd.f32 %v1259, %v1330
    %v1338 = vadd.f32 %v1260, %v1334
    %v1339 = vxor.u32 %v1337, 2147483648
    %v1340 = vxor.u32 %v1338, 2147483648
    %v1341 = vmul.f32 %v1339, 1.442695
    %v1342 = vpow.pop %v1341
    %v1343 = vmul.f32 %v1340, 1.442695
    %v1344 = vpow.pop %v1343
    %v1345 = vadd.f32 %v1342, 1.0
    %v1346 = vadd.f32 %v1344, 1.0
    %v1347 = vrcp.pop %v1345
    %v1348 = vmul.f32 1.0, %v1347
    %v1349 = vrcp.pop %v1346
    %v1350 = vmul.f32 1.0, %v1349
    %v1351 = vtanh.pop %v1337
    %v1352 = vtanh.pop %v1338
    %v1353 = vmul.f32 %v1348, %v1179
    %v1354 = vmul.f32 %v1350, %v1180
    %1357 = vrot.lane.b32.xlu0 %v1351, 64
    %v1358 = vpop.permute.xlu0 %1357
    %1359 = vrot.lane.b32.xlu0 %v1352, 64
    %v1360 = vpop.permute.xlu0 %1359
    %v1363 = vmul.f32 %v1348, %v1358
    %v1364 = vmul.f32 %v1350, %v1360
    %1367 = vrot.lane.b32.xlu0 %v1363, 32
    %v1368 = vpop.permute.xlu0 %1367
    %1369 = vrot.lane.b32.xlu0 %v1364, 32
    %v1370 = vpop.permute.xlu0 %1369
    %v1373 = vadd.f32 %v1353, %v1368
    %v1374 = vadd.f32 %v1354, %v1370
    %v1375 = vtanh.pop %v1373
    %v1376 = vtanh.pop %v1374
    %1379 = vrot.lane.b32.xlu0 %v1375, 64
    %v1380 = vpop.permute.xlu0 %1379
    %1381 = vrot.lane.b32.xlu0 %v1376, 64
    %v1382 = vpop.permute.xlu0 %1381
    %v1385 = vmul.f32 %v1348, %v1380
    %v1386 = vmul.f32 %v1350, %v1382
    %v1389 = vrot.slane %v1386, 7
    %v1390 = vsel %vm206, %v1389, %v1385
    %1391 = vrot.lane.b32.xlu0 %v1390, 32
    %v1392 = vpop.permute.xlu0 %1391
    %v1394 = vsel %vm211, %v1392, 0.0
    %1395 = vadd.xlane.f32.xlu0 %v1394
    %v1396 = vpop.xlane.xlu0 %1395
    %v1397 = vmul.f32 %v1396, %v215
    %v1399 = vrot.slane %v1397, 1
    %v1402 = vsub.f32 %v1385, %v1397
    %v1403 = vsub.f32 %v1386, %v1399
    %v1404 = vmul.f32 %v1402, %v1402
    %v1405 = vmul.f32 %v1403, %v1403
    %v1408 = vrot.slane %v1405, 7
    %v1409 = vsel %vm206, %v1408, %v1404
    %1410 = vrot.lane.b32.xlu0 %v1409, 32
    %v1411 = vpop.permute.xlu0 %1410
    %v1413 = vsel %vm211, %v1411, 0.0
    %1414 = vadd.xlane.f32.xlu0 %v1413
    %v1415 = vpop.xlane.xlu0 %1414
    %v1416 = vmul.f32 %v1415, %v215
    %v1417 = vadd.f32 %v1416, 1e-05
    %v1418 = vrsqrt.pop %v1417
    %v1420 = vrot.slane %v1418, 1
    %v1423 = vmul.f32 %v1402, %v1418
    %v1424 = vmul.f32 %v1403, %v1420
    %v1425 = vmul.f32 %v1423, %v250
    %v1426 = vmul.f32 %v1424, %v250
    %v1427 = vadd.f32 %v1425, %v260
    %v1428 = vadd.f32 %v1426, %v260
    %v1429 = vxor.u32 %v1427, 2147483648
    %v1430 = vxor.u32 %v1428, 2147483648
    %v1431 = vmul.f32 %v1429, 1.442695
    %v1432 = vpow.pop %v1431
    %v1433 = vmul.f32 %v1430, 1.442695
    %v1434 = vpow.pop %v1433
    %v1435 = vadd.f32 %v1432, 1.0
    %v1436 = vadd.f32 %v1434, 1.0
    %v1437 = vrcp.pop %v1435
    %v1438 = vmul.f32 1.0, %v1437
    %v1439 = vrcp.pop %v1436
    %v1440 = vmul.f32 1.0, %v1439
    %v1441 = vmul.f32 %v1427, %v1438
    %v1442 = vmul.f32 %v1428, %v1440
    %1445 = vrot.lane.b32.xlu0 %v1441, 32
    %v1446 = vpop.permute.xlu0 %1445
    %1447 = vrot.lane.b32.xlu0 %v1442, 32
    %v1448 = vpop.permute.xlu0 %1447
    %1451 = vst.msk [vmem:[#allocation7 + $0x6] sm:$0x1] %vm286, %v1446
    %1452 = vst.msk [vmem:[#allocation7 + $0xe] sm:$0x1] %vm286, %v1448
    %v1453 = vld [vmem:[#allocation2 + $0x7] sm:$0x1]
    %v1454 = vld [vmem:[#allocation2 + $0xf] sm:$0x1]
    %v1455 = vsel %vm67, %v1392, 0
    %1457 = vmatprep.subr.mxu0 0.0
    %1458 = vmatpush1.msra.mxu0 %v57
    %1459 = vmatprep.subr.mxu0 0.0
    %1460 = vmatpush1.msra.mxu0 %v58
    %1461 = vmatprep.subr.mxu0 0.0
    %1462 = vmatpush1.msra.mxu0 %v59
    %1463 = vmatprep.subr.mxu0 0.0
    %1464 = vmatpush1.msra.mxu0 %v60
    %1465 = vmatprep.subr.mxu0 0.0
    %1466 = vmatpush1.msra.mxu0 0.0
    %1467 = vmatprep.subr.mxu0 0.0
    %1468 = vmatpush1.msra.mxu0 0.0
    %1469 = vmatprep.subr.mxu0 0.0
    %1470 = vmatpush1.msra.mxu0 0.0
    %1471 = vmatprep.subr.mxu0 0.0
    %1472 = vmatpush1.msra.mxu0 0.0
    %1473 = vmatprep.subr.mxu0 0.0
    %1474 = vmatpush1.msra.mxu0 0.0
    %1475 = vmatprep.subr.mxu0 0.0
    %1476 = vmatpush1.msra.mxu0 0.0
    %1477 = vmatprep.subr.mxu0 0.0
    %1478 = vmatpush1.msra.mxu0 0.0
    %1479 = vmatprep.subr.mxu0 0.0
    %1480 = vmatpush1.msra.mxu0 0.0
    %1481 = vmatprep.subr.mxu0 0.0
    %1482 = vmatpush1.msra.mxu0 0.0
    %1483 = vmatprep.subr.mxu0 0.0
    %1484 = vmatpush1.msra.mxu0 0.0
    %1485 = vmatprep.subr.mxu0 0.0
    %1486 = vmatpush1.msra.mxu0 0.0
    %1487 = vmatprep.subr.mxu0 0.0
    %1488 = vmatpush1.msra.mxu0 0.0
    %1489 = vmatprep.subr.mxu0 0.0
    %1490 = vmatpush1.msra.mxu0 0.0
    %1491 = vmatprep.subr.mxu0 0.0
    %1492 = vmatpush1.msra.mxu0 0.0
    %1493 = vmatprep.subr.mxu0 0.0
    %1494 = vmatpush1.msra.mxu0 0.0
    %1495 = vmatprep.subr.mxu0 0.0
    %1496 = vmatpush1.msra.mxu0 0.0
    %1497 = vmatprep.subr.mxu0 0.0
    %1498 = vmatpush1.msra.mxu0 0.0
    %1499 = vmatprep.subr.mxu0 0.0
    %1500 = vmatpush1.msra.mxu0 0.0
    %1501 = vmatprep.subr.mxu0 0.0
    %1502 = vmatpush1.msra.mxu0 0.0
    %1503 = vmatprep.subr.mxu0 0.0
    %1504 = vmatpush1.msra.mxu0 0.0
    %1505 = vmatprep.subr.mxu0 0.0
    %1506 = vmatpush1.msra.mxu0 0.0
    %1507 = vmatprep.subr.mxu0 0.0
    %1508 = vmatpush1.msra.mxu0 0.0
    %1509 = vmatprep.subr.mxu0 0.0
    %1510 = vmatpush1.msra.mxu0 0.0
    %1511 = vmatprep.subr.mxu0 0.0
    %1512 = vmatpush1.msra.mxu0 0.0
    %1513 = vmatprep.subr.mxu0 0.0
    %1514 = vmatpush1.msra.mxu0 0.0
    %1515 = vmatprep.subr.mxu0 0.0
    %1516 = vmatpush1.msra.mxu0 0.0
    %1517 = vmatprep.subr.mxu0 0.0
    %1518 = vmatpush1.msra.mxu0 0.0
    %1519 = vmatprep.subr.mxu0 0.0
    %1520 = vmatpush1.msra.mxu0 0.0
    %1521 = vmatprep.mubr.f32.mxu0 0.0
    %1522 = vmatmul.mubr.f32.gmra.mrb[0].mxu0 %v1455
    %v1523 = vpop.f32.mrb[0].mxu0
    %v1524 = vadd.f32 0.0, %v1523
    %v1525 = vpop.f32.mrb[0].mxu0
    %1526 = vdwg.mxu0
    %v1528 = vrot.slane %v1524, 1
    %v1531 = vadd.f32 %v1453, %v1524
    %v1532 = vadd.f32 %v1454, %v1528
    %v1533 = vxor.u32 %v1531, 2147483648
    %v1534 = vxor.u32 %v1532, 2147483648
    %v1535 = vmul.f32 %v1533, 1.442695
    %v1536 = vpow.pop %v1535
    %v1537 = vmul.f32 %v1534, 1.442695
    %v1538 = vpow.pop %v1537
    %v1539 = vadd.f32 %v1536, 1.0
    %v1540 = vadd.f32 %v1538, 1.0
    %v1541 = vrcp.pop %v1539
    %v1542 = vmul.f32 1.0, %v1541
    %v1543 = vrcp.pop %v1540
    %v1544 = vmul.f32 1.0, %v1543
    %v1545 = vtanh.pop %v1531
    %v1546 = vtanh.pop %v1532
    %v1547 = vmul.f32 %v1542, %v1373
    %v1548 = vmul.f32 %v1544, %v1374
    %1551 = vrot.lane.b32.xlu0 %v1545, 64
    %v1552 = vpop.permute.xlu0 %1551
    %1553 = vrot.lane.b32.xlu0 %v1546, 64
    %v1554 = vpop.permute.xlu0 %1553
    %v1557 = vmul.f32 %v1542, %v1552
    %v1558 = vmul.f32 %v1544, %v1554
    %1561 = vrot.lane.b32.xlu0 %v1557, 32
    %v1562 = vpop.permute.xlu0 %1561
    %1563 = vrot.lane.b32.xlu0 %v1558, 32
    %v1564 = vpop.permute.xlu0 %1563
    %v1567 = vadd.f32 %v1547, %v1562
    %v1568 = vadd.f32 %v1548, %v1564
    %v1569 = vtanh.pop %v1567
    %v1570 = vtanh.pop %v1568
    %1573 = vrot.lane.b32.xlu0 %v1569, 64
    %v1574 = vpop.permute.xlu0 %1573
    %1575 = vrot.lane.b32.xlu0 %v1570, 64
    %v1576 = vpop.permute.xlu0 %1575
    %v1579 = vmul.f32 %v1542, %v1574
    %v1580 = vmul.f32 %v1544, %v1576
    %v1583 = vrot.slane %v1580, 7
    %v1584 = vsel %vm206, %v1583, %v1579
    %1585 = vrot.lane.b32.xlu0 %v1584, 32
    %v1586 = vpop.permute.xlu0 %1585
    %v1588 = vsel %vm211, %v1586, 0.0
    %1589 = vadd.xlane.f32.xlu0 %v1588
    %v1590 = vpop.xlane.xlu0 %1589
    %v1591 = vmul.f32 %v1590, %v215
    %v1593 = vrot.slane %v1591, 1
    %v1596 = vsub.f32 %v1579, %v1591
    %v1597 = vsub.f32 %v1580, %v1593
    %v1598 = vmul.f32 %v1596, %v1596
    %v1599 = vmul.f32 %v1597, %v1597
    %v1602 = vrot.slane %v1599, 7
    %v1603 = vsel %vm206, %v1602, %v1598
    %1604 = vrot.lane.b32.xlu0 %v1603, 32
    %v1605 = vpop.permute.xlu0 %1604
    %v1607 = vsel %vm211, %v1605, 0.0
    %1608 = vadd.xlane.f32.xlu0 %v1607
    %v1609 = vpop.xlane.xlu0 %1608
    %v1610 = vmul.f32 %v1609, %v215
    %v1611 = vadd.f32 %v1610, 1e-05
    %v1612 = vrsqrt.pop %v1611
    %v1614 = vrot.slane %v1612, 1
    %v1617 = vmul.f32 %v1596, %v1612
    %v1618 = vmul.f32 %v1597, %v1614
    %v1619 = vmul.f32 %v1617, %v250
    %v1620 = vmul.f32 %v1618, %v250
    %v1621 = vadd.f32 %v1619, %v260
    %v1622 = vadd.f32 %v1620, %v260
    %v1623 = vxor.u32 %v1621, 2147483648
    %v1624 = vxor.u32 %v1622, 2147483648
    %v1625 = vmul.f32 %v1623, 1.442695
    %v1626 = vpow.pop %v1625
    %v1627 = vmul.f32 %v1624, 1.442695
    %v1628 = vpow.pop %v1627
    %v1629 = vadd.f32 %v1626, 1.0
    %v1630 = vadd.f32 %v1628, 1.0
    %v1631 = vrcp.pop %v1629
    %v1632 = vmul.f32 1.0, %v1631
    %v1633 = vrcp.pop %v1630
    %v1634 = vmul.f32 1.0, %v1633
    %v1635 = vmul.f32 %v1621, %v1632
    %v1636 = vmul.f32 %v1622, %v1634
    %1639 = vrot.lane.b32.xlu0 %v1635, 32
    %v1640 = vpop.permute.xlu0 %1639
    %1641 = vrot.lane.b32.xlu0 %v1636, 32
    %v1642 = vpop.permute.xlu0 %1641
    %1645 = vst.msk [vmem:[#allocation7 + $0x7] sm:$0x1] %vm286, %v1640
    %1646 = vst.msk [vmem:[#allocation7 + $0xf] sm:$0x1] %vm286, %v1642
    %1647 = vst.msk [vmem:[#allocation8] sm:$0x3] %vm211, %v1586
    %v1650 = vrot.slane %v1568, 7
    %v1651 = vsel %vm206, %v1650, %v1567
    %1652 = vrot.lane.b32.xlu0 %v1651, 96
    %v1653 = vpop.permute.xlu0 %1652
    %1655 = vst.msk [vmem:[#allocation10] sm:$0x3] %vm211, %v1653
    // Predicated region
    $region30: #{tpu_custom_call.1} parent=1 // pred_check
      _
    $region31: #{tpu_custom_call.1} parent=1 // pred_check_branch
      %1657 = sbr.rel (0) target = $region33
    $region32: #{tpu_custom_call.1} parent=1 // pred_region
      %s1659 = ssub.s32 256, 256
      %1660 = vsyncadd [#allocation4], %s1659
      %s1661 = sshll.u32 [#allocation7], 4
      %s1662 = int_to_ptr.vmem [resolvable:$true] %s1661
      %1667 = dma.vmem_to_hbm [thread:$0]  %s1662, 256, %s4, [#allocation4], 128, 128, 8
    $region33: #{tpu_custom_call.1} parent=1 // pred_fallthru
      _
    // Predicated region
    $region34: #{tpu_custom_call.1} parent=1 // pred_check
      _
    $region35: #{tpu_custom_call.1} parent=1 // pred_check_branch
      %1669 = sbr.rel (0) target = $region37
    $region36: #{tpu_custom_call.1} parent=1 // pred_region
      %s1671 = ssub.s32 32, 32
      %1672 = vsyncadd [#allocation9], %s1671
      %s1674 = sshll.u32 [#allocation8], 4
      %s1675 = int_to_ptr.vmem [resolvable:$true] %s1674
      %1677 = dma.vmem_to_hbm [thread:$0]  %s1675, 32, %s5, [#allocation9]
    $region37: #{tpu_custom_call.1} parent=1 // pred_fallthru
      _
    // Predicated region
    $region38: #{tpu_custom_call.1} parent=1 // pred_check
      _
    $region39: #{tpu_custom_call.1} parent=1 // pred_check_branch
      %1679 = sbr.rel (0) target = $region41
    $region40: #{tpu_custom_call.1} parent=1 // pred_region
      %s1681 = ssub.s32 32, 32
      %1682 = vsyncadd [#allocation9], %s1681
      %s1684 = sshll.u32 [#allocation10], 4
      %s1685 = int_to_ptr.vmem [resolvable:$true] %s1684
      %1687 = dma.vmem_to_hbm [thread:$0]  %s1685, 32, %s6, [#allocation9]
    $region41: #{tpu_custom_call.1} parent=1 // pred_fallthru
      _
    // Predicated region
    $region42: #{tpu_custom_call.1} parent=1 // pred_check
      _
    $region43: #{tpu_custom_call.1} parent=1 // pred_check_branch
      %1689 = sbr.rel (0) target = $region45
    $region44: #{tpu_custom_call.1} parent=1 // pred_region
      %1690 = dma.done [#allocation4], 256
    $region45: #{tpu_custom_call.1} parent=1 // pred_fallthru
      _
    // Predicated region
    $region46: #{tpu_custom_call.1} parent=1 // pred_check
      _
    $region47: #{tpu_custom_call.1} parent=1 // pred_check_branch
      %1692 = sbr.rel (0) target = $region49
    $region48: #{tpu_custom_call.1} parent=1 // pred_region
      %1693 = dma.done [#allocation9], 32
    $region49: #{tpu_custom_call.1} parent=1 // pred_fallthru
      _
    // Predicated region
    $region50: #{tpu_custom_call.1} parent=1 // pred_check
      _
    $region51: #{tpu_custom_call.1} parent=1 // pred_check_branch
      %1695 = sbr.rel (0) target = $region53
    $region52: #{tpu_custom_call.1} parent=1 // pred_region
      %1696 = dma.done [#allocation9], 32
    $region53: #{tpu_custom_call.1} parent=1 // pred_fallthru
      _
    %1697 = vsyncpa [#allocation3], 1
    %1698 = vsyncpa [#allocation6], 1
    %1699 = vsyncpa [#allocation4], 1
    %1700 = vsyncpa [#allocation9], 1

</llo_original>
